<compile_context>
chip_gen: v5e
topology: v5e:2x2
jax: 0.10.0
libtpu: 0.0.40
codegen_flags: <defaults>
</compile_context>

<pallas_src>
import jax
import jax.numpy as jnp
import numpy as np
from jax import lax
from jax.experimental import pallas as pl
from jax.experimental.pallas import tpu as pltpu


_CIN = 3
_COUT = 3
_KH = 2
_KW = 2
_LANES = 128  # physical lane width; canvas lane dim is padded to this
# Layer schedule: (weight index, bias index) into the (w1,w2)/(b1,b2) operands.
_LAYERS = ((0, 0), (0, 0), (1, 1), (1, 1), (0, 1), (1, 0))


def _shift(x, dh, dw):
    """patch[h, l] = x[h + dh, l + dw] on the fixed canvas.

    Circular rolls; wrapped entries land only in the garbage border, which is
    never consumed inside the final valid-conv crop.
    """
    h, l = x.shape
    if dh:
        x = pltpu.roll(x, h - dh, 0)   # result[i] = x[(i + dh) % h]
    if dw:
        x = pltpu.roll(x, l - dw, 1)   # result[j] = x[(j + dw) % l]
    return x


def _conv_step(chans, w_ref, b_ref):
    """One valid 2x2 / stride-1 conv on VMEM-resident channel canvases.

    chans: list of Cin arrays, each (H, LANES) f32 (values, not refs).
    w_ref: SMEM (Cout*Cin*KH*KW,) f32, OIHW flattened.
    b_ref: SMEM (Cout,) f32.
    Returns list of Cout arrays, each (H, LANES) f32 (same fixed canvas).
    """
    h, l = chans[0].shape

    # 3 live accumulators; bias splat hoisted (one per output channel).
    acc = [jnp.full((h, l), b_ref[co], dtype=jnp.float32) for co in range(_COUT)]

    # (ci, dh, dw) outer / co inner: exactly one shifted patch live at a time,
    # still sliced/rolled once and reused across all 3 output channels.
    for ci in range(_CIN):
        for dh in range(_KH):
            for dw in range(_KW):
                patch = _shift(chans[ci], dh, dw)
                for co in range(_COUT):
                    widx = ((co * _CIN + ci) * _KH + dh) * _KW + dw
                    acc[co] = acc[co] + w_ref[widx] * patch
    return acc


def fused_net_kernel(w1_ref, b1_ref, w2_ref, b2_ref, x_ref, o_ref):
    """Entire 6-conv network in one kernel invocation (grid=())."""
    w_refs = (w1_ref, w2_ref)
    b_refs = (b1_ref, b2_ref)

    # Channel-major input: free leading-axis reads, one (H, 128) canvas per
    # input channel kept resident in vregs/VMEM for all six layers.
    chans = [x_ref[ci] for ci in range(_CIN)]

    for (wi, bi) in _LAYERS:
        chans = _conv_step(chans, w_refs[wi], b_refs[bi])

    # Channel-major, lane-dense (128-wide, unmasked) leading-axis stores.
    for co in range(_COUT):
        o_ref[co] = chans[co]


def reuse_functional_layer_net(x, w1, b1, w2, b2):
    """Fused Pallas implementation of ReuseFunctionalLayerNet.forward."""
    n, cin, h, wd = x.shape
    assert cin == _CIN
    n_layers = len(_LAYERS)
    hout = h - n_layers * (_KH - 1)
    wout = wd - n_layers * (_KW - 1)

    lanes_used = n * wd
    assert lanes_used <= _LANES, "batch*width must fit one 128-lane row"
    # TODO(synk): for larger batch/width, tile N over a 'parallel' grid axis
    # instead of packing everything into one lane row.

    # Channel-major, batch folded into lanes: (Cin, H, N*W), zero-padded to the
    # physical 128-lane width (free: vregs are 128 lanes wide regardless).
    xp = jnp.transpose(x.astype(jnp.float32), (1, 2, 0, 3)).reshape(cin, h, lanes_used)
    xp = jnp.pad(xp, ((0, 0), (0, 0), (0, _LANES - lanes_used)))

    # Parameters prepared exactly once: flat f32 weights + biases, SMEM.
    w1_flat = w1.reshape(-1).astype(jnp.float32)
    w2_flat = w2.reshape(-1).astype(jnp.float32)
    b1 = b1.astype(jnp.float32)
    b2 = b2.astype(jnp.float32)

    smem = pl.BlockSpec(memory_space=pltpu.MemorySpace.SMEM)
    vmem = pl.BlockSpec(memory_space=pltpu.MemorySpace.VMEM)

    out = pl.pallas_call(
        fused_net_kernel,
        out_shape=jax.ShapeDtypeStruct((_COUT, h, _LANES), jnp.float32),
        in_specs=[smem, smem, smem, smem, vmem],
        out_specs=vmem,
    )(w1_flat, b1, w2_flat, b2, xp)

    # Single final crop of the fixed canvas back to the valid conv output,
    # then restore NCHW.  ~6 KB of XLA slice/transpose work in the wrapper.
    out = out[:, :hout, :lanes_used].reshape(_COUT, hout, n, wd)[:, :, :, :wout]
    return jnp.transpose(out, (2, 0, 1, 3))


# ---------------------------------------------------------------------------
# Pure-JAX reference for the correctness check.
# ---------------------------------------------------------------------------
def _conv2d_ref(x, w, b):
    out = lax.conv_general_dilated(
        x, w, window_strides=(1, 1), padding="VALID",
        dimension_numbers=("NCHW", "OIHW", "NCHW"),
        precision=lax.Precision.HIGHEST)
    return out + b.reshape(1, -1, 1, 1)


def _net_ref(x, w1, b1, w2, b2):
    x = _conv2d_ref(x, w1, b1)
    x = _conv2d_ref(x, w1, b1)
    x = _conv2d_ref(x, w2, b2)
    x = _conv2d_ref(x, w2, b2)
    x = _conv2d_ref(x, w1, b2)
    x = _conv2d_ref(x, w2, b1)
    return x


if __name__ == "__main__":
    key = jax.random.PRNGKey(0)
    k_x, k_w1, k_b1, k_w2, k_b2 = jax.random.split(key, 5)

    # Input: batch=2, channels=3 (required by the 3-in-channel weights), 16x16.
    x = jax.random.normal(k_x, (2, 3, 16, 16), dtype=jnp.float32)

    # Parameters: torch.randn-like standard normal init (deterministic).
    w1 = jax.random.normal(k_w1, (3, 3, 2, 2), dtype=jnp.float32)
    b1 = jax.random.normal(k_b1, (3,), dtype=jnp.float32)
    w2 = jax.random.normal(k_w2, (3, 3, 2, 2), dtype=jnp.float32)
    b2 = jax.random.normal(k_b2, (3,), dtype=jnp.float32)

    out = reuse_functional_layer_net(x, w1, b1, w2, b2)
    out = jax.block_until_ready(out)

    # Sanity check against pure-JAX reference (shape: (2, 3, 10, 10)).
    ref = _net_ref(x, w1, b1, w2, b2)
    assert out.shape == (2, 3, 10, 10), out.shape
    np.testing.assert_allclose(np.asarray(out), np.asarray(ref),
                               rtol=1e-4, atol=1e-3)

    print("KERNEL_OK")
</pallas_src>

<mosaic_0001>
module attributes {stable_mosaic.version = 11 : i64} {
  func.func @fused_net_kernel(%arg0: memref<36xf32, #tpu.memory_space<smem>>, %arg1: memref<3xf32, #tpu.memory_space<smem>>, %arg2: memref<36xf32, #tpu.memory_space<smem>>, %arg3: memref<3xf32, #tpu.memory_space<smem>>, %arg4: memref<3x16x128xf32, #tpu.memory_space<vmem>>, %arg5: memref<3x16x128xf32, #tpu.memory_space<vmem>>) attributes {dimension_semantics = [], scalar_prefetch = 0 : i64, scratch_operands = 0 : i64, tpu.core_type = #tpu.core_type<tc>} {
    %c0 = arith.constant 0 : index
    %c0_0 = arith.constant 0 : index
    %c0_1 = arith.constant 0 : index
    %0 = vector.load %arg4[%c0, %c0_0, %c0_1] : memref<3x16x128xf32, #tpu.memory_space<vmem>>, vector<1x16x128xf32>
    %1 = vector.shape_cast %0 : vector<1x16x128xf32> to vector<16x128xf32>
    %c1 = arith.constant 1 : index
    %c0_2 = arith.constant 0 : index
    %c0_3 = arith.constant 0 : index
    %2 = vector.load %arg4[%c1, %c0_2, %c0_3] : memref<3x16x128xf32, #tpu.memory_space<vmem>>, vector<1x16x128xf32>
    %3 = vector.shape_cast %2 : vector<1x16x128xf32> to vector<16x128xf32>
    %c2 = arith.constant 2 : index
    %c0_4 = arith.constant 0 : index
    %c0_5 = arith.constant 0 : index
    %4 = vector.load %arg4[%c2, %c0_4, %c0_5] : memref<3x16x128xf32, #tpu.memory_space<vmem>>, vector<1x16x128xf32>
    %5 = vector.shape_cast %4 : vector<1x16x128xf32> to vector<16x128xf32>
    %c0_6 = arith.constant 0 : index
    %6 = memref.load %arg1[%c0_6] : memref<3xf32, #tpu.memory_space<smem>>
    %7 = vector.broadcast %6 : f32 to vector<16x128xf32>
    %c1_7 = arith.constant 1 : index
    %8 = memref.load %arg1[%c1_7] : memref<3xf32, #tpu.memory_space<smem>>
    %9 = vector.broadcast %8 : f32 to vector<16x128xf32>
    %c2_8 = arith.constant 2 : index
    %10 = memref.load %arg1[%c2_8] : memref<3xf32, #tpu.memory_space<smem>>
    %11 = vector.broadcast %10 : f32 to vector<16x128xf32>
    %c0_9 = arith.constant 0 : index
    %12 = memref.load %arg0[%c0_9] : memref<36xf32, #tpu.memory_space<smem>>
    %13 = vector.broadcast %12 : f32 to vector<16x128xf32>
    %14 = arith.mulf %13, %1 : vector<16x128xf32>
    %15 = arith.addf %7, %14 : vector<16x128xf32>
    %c12 = arith.constant 12 : index
    %16 = memref.load %arg0[%c12] : memref<36xf32, #tpu.memory_space<smem>>
    %17 = vector.broadcast %16 : f32 to vector<16x128xf32>
    %18 = arith.mulf %17, %1 : vector<16x128xf32>
    %19 = arith.addf %9, %18 : vector<16x128xf32>
    %c24 = arith.constant 24 : index
    %20 = memref.load %arg0[%c24] : memref<36xf32, #tpu.memory_space<smem>>
    %21 = vector.broadcast %20 : f32 to vector<16x128xf32>
    %22 = arith.mulf %21, %1 : vector<16x128xf32>
    %23 = arith.addf %11, %22 : vector<16x128xf32>
    %c127_i32 = arith.constant 127 : i32
    %24 = tpu.dynamic_rotate %1 by %c127_i32 dim 1 : vector<16x128xf32>, i32 -> vector<16x128xf32>
    %c1_10 = arith.constant 1 : index
    %25 = memref.load %arg0[%c1_10] : memref<36xf32, #tpu.memory_space<smem>>
    %26 = vector.broadcast %25 : f32 to vector<16x128xf32>
    %27 = arith.mulf %26, %24 : vector<16x128xf32>
    %28 = arith.addf %15, %27 : vector<16x128xf32>
    %c13 = arith.constant 13 : index
    %29 = memref.load %arg0[%c13] : memref<36xf32, #tpu.memory_space<smem>>
    %30 = vector.broadcast %29 : f32 to vector<16x128xf32>
    %31 = arith.mulf %30, %24 : vector<16x128xf32>
    %32 = arith.addf %19, %31 : vector<16x128xf32>
    %c25 = arith.constant 25 : index
    %33 = memref.load %arg0[%c25] : memref<36xf32, #tpu.memory_space<smem>>
    %34 = vector.broadcast %33 : f32 to vector<16x128xf32>
    %35 = arith.mulf %34, %24 : vector<16x128xf32>
    %36 = arith.addf %23, %35 : vector<16x128xf32>
    %c15_i32 = arith.constant 15 : i32
    %37 = tpu.dynamic_rotate %1 by %c15_i32 dim 0 : vector<16x128xf32>, i32 -> vector<16x128xf32>
    %c2_11 = arith.constant 2 : index
    %38 = memref.load %arg0[%c2_11] : memref<36xf32, #tpu.memory_space<smem>>
    %39 = vector.broadcast %38 : f32 to vector<16x128xf32>
    %40 = arith.mulf %39, %37 : vector<16x128xf32>
    %41 = arith.addf %28, %40 : vector<16x128xf32>
    %c14 = arith.constant 14 : index
    %42 = memref.load %arg0[%c14] : memref<36xf32, #tpu.memory_space<smem>>
    %43 = vector.broadcast %42 : f32 to vector<16x128xf32>
    %44 = arith.mulf %43, %37 : vector<16x128xf32>
    %45 = arith.addf %32, %44 : vector<16x128xf32>
    %c26 = arith.constant 26 : index
    %46 = memref.load %arg0[%c26] : memref<36xf32, #tpu.memory_space<smem>>
    %47 = vector.broadcast %46 : f32 to vector<16x128xf32>
    %48 = arith.mulf %47, %37 : vector<16x128xf32>
    %49 = arith.addf %36, %48 : vector<16x128xf32>
    %c15_i32_12 = arith.constant 15 : i32
    %50 = tpu.dynamic_rotate %1 by %c15_i32_12 dim 0 : vector<16x128xf32>, i32 -> vector<16x128xf32>
    %c127_i32_13 = arith.constant 127 : i32
    %51 = tpu.dynamic_rotate %50 by %c127_i32_13 dim 1 : vector<16x128xf32>, i32 -> vector<16x128xf32>
    %c3 = arith.constant 3 : index
    %52 = memref.load %arg0[%c3] : memref<36xf32, #tpu.memory_space<smem>>
    %53 = vector.broadcast %52 : f32 to vector<16x128xf32>
    %54 = arith.mulf %53, %51 : vector<16x128xf32>
    %55 = arith.addf %41, %54 : vector<16x128xf32>
    %c15 = arith.constant 15 : index
    %56 = memref.load %arg0[%c15] : memref<36xf32, #tpu.memory_space<smem>>
    %57 = vector.broadcast %56 : f32 to vector<16x128xf32>
    %58 = arith.mulf %57, %51 : vector<16x128xf32>
    %59 = arith.addf %45, %58 : vector<16x128xf32>
    %c27 = arith.constant 27 : index
    %60 = memref.load %arg0[%c27] : memref<36xf32, #tpu.memory_space<smem>>
    %61 = vector.broadcast %60 : f32 to vector<16x128xf32>
    %62 = arith.mulf %61, %51 : vector<16x128xf32>
    %63 = arith.addf %49, %62 : vector<16x128xf32>
    %c4 = arith.constant 4 : index
    %64 = memref.load %arg0[%c4] : memref<36xf32, #tpu.memory_space<smem>>
    %65 = vector.broadcast %64 : f32 to vector<16x128xf32>
    %66 = arith.mulf %65, %3 : vector<16x128xf32>
    %67 = arith.addf %55, %66 : vector<16x128xf32>
    %c16 = arith.constant 16 : index
    %68 = memref.load %arg0[%c16] : memref<36xf32, #tpu.memory_space<smem>>
    %69 = vector.broadcast %68 : f32 to vector<16x128xf32>
    %70 = arith.mulf %69, %3 : vector<16x128xf32>
    %71 = arith.addf %59, %70 : vector<16x128xf32>
    %c28 = arith.constant 28 : index
    %72 = memref.load %arg0[%c28] : memref<36xf32, #tpu.memory_space<smem>>
    %73 = vector.broadcast %72 : f32 to vector<16x128xf32>
    %74 = arith.mulf %73, %3 : vector<16x128xf32>
    %75 = arith.addf %63, %74 : vector<16x128xf32>
    %c127_i32_14 = arith.constant 127 : i32
    %76 = tpu.dynamic_rotate %3 by %c127_i32_14 dim 1 : vector<16x128xf32>, i32 -> vector<16x128xf32>
    %c5 = arith.constant 5 : index
    %77 = memref.load %arg0[%c5] : memref<36xf32, #tpu.memory_space<smem>>
    %78 = vector.broadcast %77 : f32 to vector<16x128xf32>
    %79 = arith.mulf %78, %76 : vector<16x128xf32>
    %80 = arith.addf %67, %79 : vector<16x128xf32>
    %c17 = arith.constant 17 : index
    %81 = memref.load %arg0[%c17] : memref<36xf32, #tpu.memory_space<smem>>
    %82 = vector.broadcast %81 : f32 to vector<16x128xf32>
    %83 = arith.mulf %82, %76 : vector<16x128xf32>
    %84 = arith.addf %71, %83 : vector<16x128xf32>
    %c29 = arith.constant 29 : index
    %85 = memref.load %arg0[%c29] : memref<36xf32, #tpu.memory_space<smem>>
    %86 = vector.broadcast %85 : f32 to vector<16x128xf32>
    %87 = arith.mulf %86, %76 : vector<16x128xf32>
    %88 = arith.addf %75, %87 : vector<16x128xf32>
    %c15_i32_15 = arith.constant 15 : i32
    %89 = tpu.dynamic_rotate %3 by %c15_i32_15 dim 0 : vector<16x128xf32>, i32 -> vector<16x128xf32>
    %c6 = arith.constant 6 : index
    %90 = memref.load %arg0[%c6] : memref<36xf32, #tpu.memory_space<smem>>
    %91 = vector.broadcast %90 : f32 to vector<16x128xf32>
    %92 = arith.mulf %91, %89 : vector<16x128xf32>
    %93 = arith.addf %80, %92 : vector<16x128xf32>
    %c18 = arith.constant 18 : index
    %94 = memref.load %arg0[%c18] : memref<36xf32, #tpu.memory_space<smem>>
    %95 = vector.broadcast %94 : f32 to vector<16x128xf32>
    %96 = arith.mulf %95, %89 : vector<16x128xf32>
    %97 = arith.addf %84, %96 : vector<16x128xf32>
    %c30 = arith.constant 30 : index
    %98 = memref.load %arg0[%c30] : memref<36xf32, #tpu.memory_space<smem>>
    %99 = vector.broadcast %98 : f32 to vector<16x128xf32>
    %100 = arith.mulf %99, %89 : vector<16x128xf32>
    %101 = arith.addf %88, %100 : vector<16x128xf32>
    %c15_i32_16 = arith.constant 15 : i32
    %102 = tpu.dynamic_rotate %3 by %c15_i32_16 dim 0 : vector<16x128xf32>, i32 -> vector<16x128xf32>
    %c127_i32_17 = arith.constant 127 : i32
    %103 = tpu.dynamic_rotate %102 by %c127_i32_17 dim 1 : vector<16x128xf32>, i32 -> vector<16x128xf32>
    %c7 = arith.constant 7 : index
    %104 = memref.load %arg0[%c7] : memref<36xf32, #tpu.memory_space<smem>>
    %105 = vector.broadcast %104 : f32 to vector<16x128xf32>
    %106 = arith.mulf %105, %103 : vector<16x128xf32>
    %107 = arith.addf %93, %106 : vector<16x128xf32>
    %c19 = arith.constant 19 : index
    %108 = memref.load %arg0[%c19] : memref<36xf32, #tpu.memory_space<smem>>
    %109 = vector.broadcast %108 : f32 to vector<16x128xf32>
    %110 = arith.mulf %109, %103 : vector<16x128xf32>
    %111 = arith.addf %97, %110 : vector<16x128xf32>
    %c31 = arith.constant 31 : index
    %112 = memref.load %arg0[%c31] : memref<36xf32, #tpu.memory_space<smem>>
    %113 = vector.broadcast %112 : f32 to vector<16x128xf32>
    %114 = arith.mulf %113, %103 : vector<16x128xf32>
    %115 = arith.addf %101, %114 : vector<16x128xf32>
    %c8 = arith.constant 8 : index
    %116 = memref.load %arg0[%c8] : memref<36xf32, #tpu.memory_space<smem>>
    %117 = vector.broadcast %116 : f32 to vector<16x128xf32>
    %118 = arith.mulf %117, %5 : vector<16x128xf32>
    %119 = arith.addf %107, %118 : vector<16x128xf32>
    %c20 = arith.constant 20 : index
    %120 = memref.load %arg0[%c20] : memref<36xf32, #tpu.memory_space<smem>>
    %121 = vector.broadcast %120 : f32 to vector<16x128xf32>
    %122 = arith.mulf %121, %5 : vector<16x128xf32>
    %123 = arith.addf %111, %122 : vector<16x128xf32>
    %c32 = arith.constant 32 : index
    %124 = memref.load %arg0[%c32] : memref<36xf32, #tpu.memory_space<smem>>
    %125 = vector.broadcast %124 : f32 to vector<16x128xf32>
    %126 = arith.mulf %125, %5 : vector<16x128xf32>
    %127 = arith.addf %115, %126 : vector<16x128xf32>
    %c127_i32_18 = arith.constant 127 : i32
    %128 = tpu.dynamic_rotate %5 by %c127_i32_18 dim 1 : vector<16x128xf32>, i32 -> vector<16x128xf32>
    %c9 = arith.constant 9 : index
    %129 = memref.load %arg0[%c9] : memref<36xf32, #tpu.memory_space<smem>>
    %130 = vector.broadcast %129 : f32 to vector<16x128xf32>
    %131 = arith.mulf %130, %128 : vector<16x128xf32>
    %132 = arith.addf %119, %131 : vector<16x128xf32>
    %c21 = arith.constant 21 : index
    %133 = memref.load %arg0[%c21] : memref<36xf32, #tpu.memory_space<smem>>
    %134 = vector.broadcast %133 : f32 to vector<16x128xf32>
    %135 = arith.mulf %134, %128 : vector<16x128xf32>
    %136 = arith.addf %123, %135 : vector<16x128xf32>
    %c33 = arith.constant 33 : index
    %137 = memref.load %arg0[%c33] : memref<36xf32, #tpu.memory_space<smem>>
    %138 = vector.broadcast %137 : f32 to vector<16x128xf32>
    %139 = arith.mulf %138, %128 : vector<16x128xf32>
    %140 = arith.addf %127, %139 : vector<16x128xf32>
    %c15_i32_19 = arith.constant 15 : i32
    %141 = tpu.dynamic_rotate %5 by %c15_i32_19 dim 0 : vector<16x128xf32>, i32 -> vector<16x128xf32>
    %c10 = arith.constant 10 : index
    %142 = memref.load %arg0[%c10] : memref<36xf32, #tpu.memory_space<smem>>
    %143 = vector.broadcast %142 : f32 to vector<16x128xf32>
    %144 = arith.mulf %143, %141 : vector<16x128xf32>
    %145 = arith.addf %132, %144 : vector<16x128xf32>
    %c22 = arith.constant 22 : index
    %146 = memref.load %arg0[%c22] : memref<36xf32, #tpu.memory_space<smem>>
    %147 = vector.broadcast %146 : f32 to vector<16x128xf32>
    %148 = arith.mulf %147, %141 : vector<16x128xf32>
    %149 = arith.addf %136, %148 : vector<16x128xf32>
    %c34 = arith.constant 34 : index
    %150 = memref.load %arg0[%c34] : memref<36xf32, #tpu.memory_space<smem>>
    %151 = vector.broadcast %150 : f32 to vector<16x128xf32>
    %152 = arith.mulf %151, %141 : vector<16x128xf32>
    %153 = arith.addf %140, %152 : vector<16x128xf32>
    %c15_i32_20 = arith.constant 15 : i32
    %154 = tpu.dynamic_rotate %5 by %c15_i32_20 dim 0 : vector<16x128xf32>, i32 -> vector<16x128xf32>
    %c127_i32_21 = arith.constant 127 : i32
    %155 = tpu.dynamic_rotate %154 by %c127_i32_21 dim 1 : vector<16x128xf32>, i32 -> vector<16x128xf32>
    %c11 = arith.constant 11 : index
    %156 = memref.load %arg0[%c11] : memref<36xf32, #tpu.memory_space<smem>>
    %157 = vector.broadcast %156 : f32 to vector<16x128xf32>
    %158 = arith.mulf %157, %155 : vector<16x128xf32>
    %159 = arith.addf %145, %158 : vector<16x128xf32>
    %c23 = arith.constant 23 : index
    %160 = memref.load %arg0[%c23] : memref<36xf32, #tpu.memory_space<smem>>
    %161 = vector.broadcast %160 : f32 to vector<16x128xf32>
    %162 = arith.mulf %161, %155 : vector<16x128xf32>
    %163 = arith.addf %149, %162 : vector<16x128xf32>
    %c35 = arith.constant 35 : index
    %164 = memref.load %arg0[%c35] : memref<36xf32, #tpu.memory_space<smem>>
    %165 = vector.broadcast %164 : f32 to vector<16x128xf32>
    %166 = arith.mulf %165, %155 : vector<16x128xf32>
    %167 = arith.addf %153, %166 : vector<16x128xf32>
    %c0_22 = arith.constant 0 : index
    %168 = memref.load %arg1[%c0_22] : memref<3xf32, #tpu.memory_space<smem>>
    %169 = vector.broadcast %168 : f32 to vector<16x128xf32>
    %c1_23 = arith.constant 1 : index
    %170 = memref.load %arg1[%c1_23] : memref<3xf32, #tpu.memory_space<smem>>
    %171 = vector.broadcast %170 : f32 to vector<16x128xf32>
    %c2_24 = arith.constant 2 : index
    %172 = memref.load %arg1[%c2_24] : memref<3xf32, #tpu.memory_space<smem>>
    %173 = vector.broadcast %172 : f32 to vector<16x128xf32>
    %c0_25 = arith.constant 0 : index
    %174 = memref.load %arg0[%c0_25] : memref<36xf32, #tpu.memory_space<smem>>
    %175 = vector.broadcast %174 : f32 to vector<16x128xf32>
    %176 = arith.mulf %175, %159 : vector<16x128xf32>
    %177 = arith.addf %169, %176 : vector<16x128xf32>
    %c12_26 = arith.constant 12 : index
    %178 = memref.load %arg0[%c12_26] : memref<36xf32, #tpu.memory_space<smem>>
    %179 = vector.broadcast %178 : f32 to vector<16x128xf32>
    %180 = arith.mulf %179, %159 : vector<16x128xf32>
    %181 = arith.addf %171, %180 : vector<16x128xf32>
    %c24_27 = arith.constant 24 : index
    %182 = memref.load %arg0[%c24_27] : memref<36xf32, #tpu.memory_space<smem>>
    %183 = vector.broadcast %182 : f32 to vector<16x128xf32>
    %184 = arith.mulf %183, %159 : vector<16x128xf32>
    %185 = arith.addf %173, %184 : vector<16x128xf32>
    %c127_i32_28 = arith.constant 127 : i32
    %186 = tpu.dynamic_rotate %159 by %c127_i32_28 dim 1 : vector<16x128xf32>, i32 -> vector<16x128xf32>
    %c1_29 = arith.constant 1 : index
    %187 = memref.load %arg0[%c1_29] : memref<36xf32, #tpu.memory_space<smem>>
    %188 = vector.broadcast %187 : f32 to vector<16x128xf32>
    %189 = arith.mulf %188, %186 : vector<16x128xf32>
    %190 = arith.addf %177, %189 : vector<16x128xf32>
    %c13_30 = arith.constant 13 : index
    %191 = memref.load %arg0[%c13_30] : memref<36xf32, #tpu.memory_space<smem>>
    %192 = vector.broadcast %191 : f32 to vector<16x128xf32>
    %193 = arith.mulf %192, %186 : vector<16x128xf32>
    %194 = arith.addf %181, %193 : vector<16x128xf32>
    %c25_31 = arith.constant 25 : index
    %195 = memref.load %arg0[%c25_31] : memref<36xf32, #tpu.memory_space<smem>>
    %196 = vector.broadcast %195 : f32 to vector<16x128xf32>
    %197 = arith.mulf %196, %186 : vector<16x128xf32>
    %198 = arith.addf %185, %197 : vector<16x128xf32>
    %c15_i32_32 = arith.constant 15 : i32
    %199 = tpu.dynamic_rotate %159 by %c15_i32_32 dim 0 : vector<16x128xf32>, i32 -> vector<16x128xf32>
    %c2_33 = arith.constant 2 : index
    %200 = memref.load %arg0[%c2_33] : memref<36xf32, #tpu.memory_space<smem>>
    %201 = vector.broadcast %200 : f32 to vector<16x128xf32>
    %202 = arith.mulf %201, %199 : vector<16x128xf32>
    %203 = arith.addf %190, %202 : vector<16x128xf32>
    %c14_34 = arith.constant 14 : index
    %204 = memref.load %arg0[%c14_34] : memref<36xf32, #tpu.memory_space<smem>>
    %205 = vector.broadcast %204 : f32 to vector<16x128xf32>
    %206 = arith.mulf %205, %199 : vector<16x128xf32>
    %207 = arith.addf %194, %206 : vector<16x128xf32>
    %c26_35 = arith.constant 26 : index
    %208 = memref.load %arg0[%c26_35] : memref<36xf32, #tpu.memory_space<smem>>
    %209 = vector.broadcast %208 : f32 to vector<16x128xf32>
    %210 = arith.mulf %209, %199 : vector<16x128xf32>
    %211 = arith.addf %198, %210 : vector<16x128xf32>
    %c15_i32_36 = arith.constant 15 : i32
    %212 = tpu.dynamic_rotate %159 by %c15_i32_36 dim 0 : vector<16x128xf32>, i32 -> vector<16x128xf32>
    %c127_i32_37 = arith.constant 127 : i32
    %213 = tpu.dynamic_rotate %212 by %c127_i32_37 dim 1 : vector<16x128xf32>, i32 -> vector<16x128xf32>
    %c3_38 = arith.constant 3 : index
    %214 = memref.load %arg0[%c3_38] : memref<36xf32, #tpu.memory_space<smem>>
    %215 = vector.broadcast %214 : f32 to vector<16x128xf32>
    %216 = arith.mulf %215, %213 : vector<16x128xf32>
    %217 = arith.addf %203, %216 : vector<16x128xf32>
    %c15_39 = arith.constant 15 : index
    %218 = memref.load %arg0[%c15_39] : memref<36xf32, #tpu.memory_space<smem>>
    %219 = vector.broadcast %218 : f32 to vector<16x128xf32>
    %220 = arith.mulf %219, %213 : vector<16x128xf32>
    %221 = arith.addf %207, %220 : vector<16x128xf32>
    %c27_40 = arith.constant 27 : index
    %222 = memref.load %arg0[%c27_40] : memref<36xf32, #tpu.memory_space<smem>>
    %223 = vector.broadcast %222 : f32 to vector<16x128xf32>
    %224 = arith.mulf %223, %213 : vector<16x128xf32>
    %225 = arith.addf %211, %224 : vector<16x128xf32>
    %c4_41 = arith.constant 4 : index
    %226 = memref.load %arg0[%c4_41] : memref<36xf32, #tpu.memory_space<smem>>
    %227 = vector.broadcast %226 : f32 to vector<16x128xf32>
    %228 = arith.mulf %227, %163 : vector<16x128xf32>
    %229 = arith.addf %217, %228 : vector<16x128xf32>
    %c16_42 = arith.constant 16 : index
    %230 = memref.load %arg0[%c16_42] : memref<36xf32, #tpu.memory_space<smem>>
    %231 = vector.broadcast %230 : f32 to vector<16x128xf32>
    %232 = arith.mulf %231, %163 : vector<16x128xf32>
    %233 = arith.addf %221, %232 : vector<16x128xf32>
    %c28_43 = arith.constant 28 : index
    %234 = memref.load %arg0[%c28_43] : memref<36xf32, #tpu.memory_space<smem>>
    %235 = vector.broadcast %234 : f32 to vector<16x128xf32>
    %236 = arith.mulf %235, %163 : vector<16x128xf32>
    %237 = arith.addf %225, %236 : vector<16x128xf32>
    %c127_i32_44 = arith.constant 127 : i32
    %238 = tpu.dynamic_rotate %163 by %c127_i32_44 dim 1 : vector<16x128xf32>, i32 -> vector<16x128xf32>
    %c5_45 = arith.constant 5 : index
    %239 = memref.load %arg0[%c5_45] : memref<36xf32, #tpu.memory_space<smem>>
    %240 = vector.broadcast %239 : f32 to vector<16x128xf32>
    %241 = arith.mulf %240, %238 : vector<16x128xf32>
    %242 = arith.addf %229, %241 : vector<16x128xf32>
    %c17_46 = arith.constant 17 : index
    %243 = memref.load %arg0[%c17_46] : memref<36xf32, #tpu.memory_space<smem>>
    %244 = vector.broadcast %243 : f32 to vector<16x128xf32>
    %245 = arith.mulf %244, %238 : vector<16x128xf32>
    %246 = arith.addf %233, %245 : vector<16x128xf32>
    %c29_47 = arith.constant 29 : index
    %247 = memref.load %arg0[%c29_47] : memref<36xf32, #tpu.memory_space<smem>>
    %248 = vector.broadcast %247 : f32 to vector<16x128xf32>
    %249 = arith.mulf %248, %238 : vector<16x128xf32>
    %250 = arith.addf %237, %249 : vector<16x128xf32>
    %c15_i32_48 = arith.constant 15 : i32
    %251 = tpu.dynamic_rotate %163 by %c15_i32_48 dim 0 : vector<16x128xf32>, i32 -> vector<16x128xf32>
    %c6_49 = arith.constant 6 : index
    %252 = memref.load %arg0[%c6_49] : memref<36xf32, #tpu.memory_space<smem>>
    %253 = vector.broadcast %252 : f32 to vector<16x128xf32>
    %254 = arith.mulf %253, %251 : vector<16x128xf32>
    %255 = arith.addf %242, %254 : vector<16x128xf32>
    %c18_50 = arith.constant 18 : index
    %256 = memref.load %arg0[%c18_50] : memref<36xf32, #tpu.memory_space<smem>>
    %257 = vector.broadcast %256 : f32 to vector<16x128xf32>
    %258 = arith.mulf %257, %251 : vector<16x128xf32>
    %259 = arith.addf %246, %258 : vector<16x128xf32>
    %c30_51 = arith.constant 30 : index
    %260 = memref.load %arg0[%c30_51] : memref<36xf32, #tpu.memory_space<smem>>
    %261 = vector.broadcast %260 : f32 to vector<16x128xf32>
    %262 = arith.mulf %261, %251 : vector<16x128xf32>
    %263 = arith.addf %250, %262 : vector<16x128xf32>
    %c15_i32_52 = arith.constant 15 : i32
    %264 = tpu.dynamic_rotate %163 by %c15_i32_52 dim 0 : vector<16x128xf32>, i32 -> vector<16x128xf32>
    %c127_i32_53 = arith.constant 127 : i32
    %265 = tpu.dynamic_rotate %264 by %c127_i32_53 dim 1 : vector<16x128xf32>, i32 -> vector<16x128xf32>
    %c7_54 = arith.constant 7 : index
    %266 = memref.load %arg0[%c7_54] : memref<36xf32, #tpu.memory_space<smem>>
    %267 = vector.broadcast %266 : f32 to vector<16x128xf32>
    %268 = arith.mulf %267, %265 : vector<16x128xf32>
    %269 = arith.addf %255, %268 : vector<16x128xf32>
    %c19_55 = arith.constant 19 : index
    %270 = memref.load %arg0[%c19_55] : memref<36xf32, #tpu.memory_space<smem>>
    %271 = vector.broadcast %270 : f32 to vector<16x128xf32>
    %272 = arith.mulf %271, %265 : vector<16x128xf32>
    %273 = arith.addf %259, %272 : vector<16x128xf32>
    %c31_56 = arith.constant 31 : index
    %274 = memref.load %arg0[%c31_56] : memref<36xf32, #tpu.memory_space<smem>>
    %275 = vector.broadcast %274 : f32 to vector<16x128xf32>
    %276 = arith.mulf %275, %265 : vector<16x128xf32>
    %277 = arith.addf %263, %276 : vector<16x128xf32>
    %c8_57 = arith.constant 8 : index
    %278 = memref.load %arg0[%c8_57] : memref<36xf32, #tpu.memory_space<smem>>
    %279 = vector.broadcast %278 : f32 to vector<16x128xf32>
    %280 = arith.mulf %279, %167 : vector<16x128xf32>
    %281 = arith.addf %269, %280 : vector<16x128xf32>
    %c20_58 = arith.constant 20 : index
    %282 = memref.load %arg0[%c20_58] : memref<36xf32, #tpu.memory_space<smem>>
    %283 = vector.broadcast %282 : f32 to vector<16x128xf32>
    %284 = arith.mulf %283, %167 : vector<16x128xf32>
    %285 = arith.addf %273, %284 : vector<16x128xf32>
    %c32_59 = arith.constant 32 : index
    %286 = memref.load %arg0[%c32_59] : memref<36xf32, #tpu.memory_space<smem>>
    %287 = vector.broadcast %286 : f32 to vector<16x128xf32>
    %288 = arith.mulf %287, %167 : vector<16x128xf32>
    %289 = arith.addf %277, %288 : vector<16x128xf32>
    %c127_i32_60 = arith.constant 127 : i32
    %290 = tpu.dynamic_rotate %167 by %c127_i32_60 dim 1 : vector<16x128xf32>, i32 -> vector<16x128xf32>
    %c9_61 = arith.constant 9 : index
    %291 = memref.load %arg0[%c9_61] : memref<36xf32, #tpu.memory_space<smem>>
    %292 = vector.broadcast %291 : f32 to vector<16x128xf32>
    %293 = arith.mulf %292, %290 : vector<16x128xf32>
    %294 = arith.addf %281, %293 : vector<16x128xf32>
    %c21_62 = arith.constant 21 : index
    %295 = memref.load %arg0[%c21_62] : memref<36xf32, #tpu.memory_space<smem>>
    %296 = vector.broadcast %295 : f32 to vector<16x128xf32>
    %297 = arith.mulf %296, %290 : vector<16x128xf32>
    %298 = arith.addf %285, %297 : vector<16x128xf32>
    %c33_63 = arith.constant 33 : index
    %299 = memref.load %arg0[%c33_63] : memref<36xf32, #tpu.memory_space<smem>>
    %300 = vector.broadcast %299 : f32 to vector<16x128xf32>
    %301 = arith.mulf %300, %290 : vector<16x128xf32>
    %302 = arith.addf %289, %301 : vector<16x128xf32>
    %c15_i32_64 = arith.constant 15 : i32
    %303 = tpu.dynamic_rotate %167 by %c15_i32_64 dim 0 : vector<16x128xf32>, i32 -> vector<16x128xf32>
    %c10_65 = arith.constant 10 : index
    %304 = memref.load %arg0[%c10_65] : memref<36xf32, #tpu.memory_space<smem>>
    %305 = vector.broadcast %304 : f32 to vector<16x128xf32>
    %306 = arith.mulf %305, %303 : vector<16x128xf32>
    %307 = arith.addf %294, %306 : vector<16x128xf32>
    %c22_66 = arith.constant 22 : index
    %308 = memref.load %arg0[%c22_66] : memref<36xf32, #tpu.memory_space<smem>>
    %309 = vector.broadcast %308 : f32 to vector<16x128xf32>
    %310 = arith.mulf %309, %303 : vector<16x128xf32>
    %311 = arith.addf %298, %310 : vector<16x128xf32>
    %c34_67 = arith.constant 34 : index
    %312 = memref.load %arg0[%c34_67] : memref<36xf32, #tpu.memory_space<smem>>
    %313 = vector.broadcast %312 : f32 to vector<16x128xf32>
    %314 = arith.mulf %313, %303 : vector<16x128xf32>
    %315 = arith.addf %302, %314 : vector<16x128xf32>
    %c15_i32_68 = arith.constant 15 : i32
    %316 = tpu.dynamic_rotate %167 by %c15_i32_68 dim 0 : vector<16x128xf32>, i32 -> vector<16x128xf32>
    %c127_i32_69 = arith.constant 127 : i32
    %317 = tpu.dynamic_rotate %316 by %c127_i32_69 dim 1 : vector<16x128xf32>, i32 -> vector<16x128xf32>
    %c11_70 = arith.constant 11 : index
    %318 = memref.load %arg0[%c11_70] : memref<36xf32, #tpu.memory_space<smem>>
    %319 = vector.broadcast %318 : f32 to vector<16x128xf32>
    %320 = arith.mulf %319, %317 : vector<16x128xf32>
    %321 = arith.addf %307, %320 : vector<16x128xf32>
    %c23_71 = arith.constant 23 : index
    %322 = memref.load %arg0[%c23_71] : memref<36xf32, #tpu.memory_space<smem>>
    %323 = vector.broadcast %322 : f32 to vector<16x128xf32>
    %324 = arith.mulf %323, %317 : vector<16x128xf32>
    %325 = arith.addf %311, %324 : vector<16x128xf32>
    %c35_72 = arith.constant 35 : index
    %326 = memref.load %arg0[%c35_72] : memref<36xf32, #tpu.memory_space<smem>>
    %327 = vector.broadcast %326 : f32 to vector<16x128xf32>
    %328 = arith.mulf %327, %317 : vector<16x128xf32>
    %329 = arith.addf %315, %328 : vector<16x128xf32>
    %c0_73 = arith.constant 0 : index
    %330 = memref.load %arg3[%c0_73] : memref<3xf32, #tpu.memory_space<smem>>
    %331 = vector.broadcast %330 : f32 to vector<16x128xf32>
    %c1_74 = arith.constant 1 : index
    %332 = memref.load %arg3[%c1_74] : memref<3xf32, #tpu.memory_space<smem>>
    %333 = vector.broadcast %332 : f32 to vector<16x128xf32>
    %c2_75 = arith.constant 2 : index
    %334 = memref.load %arg3[%c2_75] : memref<3xf32, #tpu.memory_space<smem>>
    %335 = vector.broadcast %334 : f32 to vector<16x128xf32>
    %c0_76 = arith.constant 0 : index
    %336 = memref.load %arg2[%c0_76] : memref<36xf32, #tpu.memory_space<smem>>
    %337 = vector.broadcast %336 : f32 to vector<16x128xf32>
    %338 = arith.mulf %337, %321 : vector<16x128xf32>
    %339 = arith.addf %331, %338 : vector<16x128xf32>
    %c12_77 = arith.constant 12 : index
    %340 = memref.load %arg2[%c12_77] : memref<36xf32, #tpu.memory_space<smem>>
    %341 = vector.broadcast %340 : f32 to vector<16x128xf32>
    %342 = arith.mulf %341, %321 : vector<16x128xf32>
    %343 = arith.addf %333, %342 : vector<16x128xf32>
    %c24_78 = arith.constant 24 : index
    %344 = memref.load %arg2[%c24_78] : memref<36xf32, #tpu.memory_space<smem>>
    %345 = vector.broadcast %344 : f32 to vector<16x128xf32>
    %346 = arith.mulf %345, %321 : vector<16x128xf32>
    %347 = arith.addf %335, %346 : vector<16x128xf32>
    %c127_i32_79 = arith.constant 127 : i32
    %348 = tpu.dynamic_rotate %321 by %c127_i32_79 dim 1 : vector<16x128xf32>, i32 -> vector<16x128xf32>
    %c1_80 = arith.constant 1 : index
    %349 = memref.load %arg2[%c1_80] : memref<36xf32, #tpu.memory_space<smem>>
    %350 = vector.broadcast %349 : f32 to vector<16x128xf32>
    %351 = arith.mulf %350, %348 : vector<16x128xf32>
    %352 = arith.addf %339, %351 : vector<16x128xf32>
    %c13_81 = arith.constant 13 : index
    %353 = memref.load %arg2[%c13_81] : memref<36xf32, #tpu.memory_space<smem>>
    %354 = vector.broadcast %353 : f32 to vector<16x128xf32>
    %355 = arith.mulf %354, %348 : vector<16x128xf32>
    %356 = arith.addf %343, %355 : vector<16x128xf32>
    %c25_82 = arith.constant 25 : index
    %357 = memref.load %arg2[%c25_82] : memref<36xf32, #tpu.memory_space<smem>>
    %358 = vector.broadcast %357 : f32 to vector<16x128xf32>
    %359 = arith.mulf %358, %348 : vector<16x128xf32>
    %360 = arith.addf %347, %359 : vector<16x128xf32>
    %c15_i32_83 = arith.constant 15 : i32
    %361 = tpu.dynamic_rotate %321 by %c15_i32_83 dim 0 : vector<16x128xf32>, i32 -> vector<16x128xf32>
    %c2_84 = arith.constant 2 : index
    %362 = memref.load %arg2[%c2_84] : memref<36xf32, #tpu.memory_space<smem>>
    %363 = vector.broadcast %362 : f32 to vector<16x128xf32>
    %364 = arith.mulf %363, %361 : vector<16x128xf32>
    %365 = arith.addf %352, %364 : vector<16x128xf32>
    %c14_85 = arith.constant 14 : index
    %366 = memref.load %arg2[%c14_85] : memref<36xf32, #tpu.memory_space<smem>>
    %367 = vector.broadcast %366 : f32 to vector<16x128xf32>
    %368 = arith.mulf %367, %361 : vector<16x128xf32>
    %369 = arith.addf %356, %368 : vector<16x128xf32>
    %c26_86 = arith.constant 26 : index
    %370 = memref.load %arg2[%c26_86] : memref<36xf32, #tpu.memory_space<smem>>
    %371 = vector.broadcast %370 : f32 to vector<16x128xf32>
    %372 = arith.mulf %371, %361 : vector<16x128xf32>
    %373 = arith.addf %360, %372 : vector<16x128xf32>
    %c15_i32_87 = arith.constant 15 : i32
    %374 = tpu.dynamic_rotate %321 by %c15_i32_87 dim 0 : vector<16x128xf32>, i32 -> vector<16x128xf32>
    %c127_i32_88 = arith.constant 127 : i32
    %375 = tpu.dynamic_rotate %374 by %c127_i32_88 dim 1 : vector<16x128xf32>, i32 -> vector<16x128xf32>
    %c3_89 = arith.constant 3 : index
    %376 = memref.load %arg2[%c3_89] : memref<36xf32, #tpu.memory_space<smem>>
    %377 = vector.broadcast %376 : f32 to vector<16x128xf32>
    %378 = arith.mulf %377, %375 : vector<16x128xf32>
    %379 = arith.addf %365, %378 : vector<16x128xf32>
    %c15_90 = arith.constant 15 : index
    %380 = memref.load %arg2[%c15_90] : memref<36xf32, #tpu.memory_space<smem>>
    %381 = vector.broadcast %380 : f32 to vector<16x128xf32>
    %382 = arith.mulf %381, %375 : vector<16x128xf32>
    %383 = arith.addf %369, %382 : vector<16x128xf32>
    %c27_91 = arith.constant 27 : index
    %384 = memref.load %arg2[%c27_91] : memref<36xf32, #tpu.memory_space<smem>>
    %385 = vector.broadcast %384 : f32 to vector<16x128xf32>
    %386 = arith.mulf %385, %375 : vector<16x128xf32>
    %387 = arith.addf %373, %386 : vector<16x128xf32>
    %c4_92 = arith.constant 4 : index
    %388 = memref.load %arg2[%c4_92] : memref<36xf32, #tpu.memory_space<smem>>
    %389 = vector.broadcast %388 : f32 to vector<16x128xf32>
    %390 = arith.mulf %389, %325 : vector<16x128xf32>
    %391 = arith.addf %379, %390 : vector<16x128xf32>
    %c16_93 = arith.constant 16 : index
    %392 = memref.load %arg2[%c16_93] : memref<36xf32, #tpu.memory_space<smem>>
    %393 = vector.broadcast %392 : f32 to vector<16x128xf32>
    %394 = arith.mulf %393, %325 : vector<16x128xf32>
    %395 = arith.addf %383, %394 : vector<16x128xf32>
    %c28_94 = arith.constant 28 : index
    %396 = memref.load %arg2[%c28_94] : memref<36xf32, #tpu.memory_space<smem>>
    %397 = vector.broadcast %396 : f32 to vector<16x128xf32>
    %398 = arith.mulf %397, %325 : vector<16x128xf32>
    %399 = arith.addf %387, %398 : vector<16x128xf32>
    %c127_i32_95 = arith.constant 127 : i32
    %400 = tpu.dynamic_rotate %325 by %c127_i32_95 dim 1 : vector<16x128xf32>, i32 -> vector<16x128xf32>
    %c5_96 = arith.constant 5 : index
    %401 = memref.load %arg2[%c5_96] : memref<36xf32, #tpu.memory_space<smem>>
    %402 = vector.broadcast %401 : f32 to vector<16x128xf32>
    %403 = arith.mulf %402, %400 : vector<16x128xf32>
    %404 = arith.addf %391, %403 : vector<16x128xf32>
    %c17_97 = arith.constant 17 : index
    %405 = memref.load %arg2[%c17_97] : memref<36xf32, #tpu.memory_space<smem>>
    %406 = vector.broadcast %405 : f32 to vector<16x128xf32>
    %407 = arith.mulf %406, %400 : vector<16x128xf32>
    %408 = arith.addf %395, %407 : vector<16x128xf32>
    %c29_98 = arith.constant 29 : index
    %409 = memref.load %arg2[%c29_98] : memref<36xf32, #tpu.memory_space<smem>>
    %410 = vector.broadcast %409 : f32 to vector<16x128xf32>
    %411 = arith.mulf %410, %400 : vector<16x128xf32>
    %412 = arith.addf %399, %411 : vector<16x128xf32>
    %c15_i32_99 = arith.constant 15 : i32
    %413 = tpu.dynamic_rotate %325 by %c15_i32_99 dim 0 : vector<16x128xf32>, i32 -> vector<16x128xf32>
    %c6_100 = arith.constant 6 : index
    %414 = memref.load %arg2[%c6_100] : memref<36xf32, #tpu.memory_space<smem>>
    %415 = vector.broadcast %414 : f32 to vector<16x128xf32>
    %416 = arith.mulf %415, %413 : vector<16x128xf32>
    %417 = arith.addf %404, %416 : vector<16x128xf32>
    %c18_101 = arith.constant 18 : index
    %418 = memref.load %arg2[%c18_101] : memref<36xf32, #tpu.memory_space<smem>>
    %419 = vector.broadcast %418 : f32 to vector<16x128xf32>
    %420 = arith.mulf %419, %413 : vector<16x128xf32>
    %421 = arith.addf %408, %420 : vector<16x128xf32>
    %c30_102 = arith.constant 30 : index
    %422 = memref.load %arg2[%c30_102] : memref<36xf32, #tpu.memory_space<smem>>
    %423 = vector.broadcast %422 : f32 to vector<16x128xf32>
    %424 = arith.mulf %423, %413 : vector<16x128xf32>
    %425 = arith.addf %412, %424 : vector<16x128xf32>
    %c15_i32_103 = arith.constant 15 : i32
    %426 = tpu.dynamic_rotate %325 by %c15_i32_103 dim 0 : vector<16x128xf32>, i32 -> vector<16x128xf32>
    %c127_i32_104 = arith.constant 127 : i32
    %427 = tpu.dynamic_rotate %426 by %c127_i32_104 dim 1 : vector<16x128xf32>, i32 -> vector<16x128xf32>
    %c7_105 = arith.constant 7 : index
    %428 = memref.load %arg2[%c7_105] : memref<36xf32, #tpu.memory_space<smem>>
    %429 = vector.broadcast %428 : f32 to vector<16x128xf32>
    %430 = arith.mulf %429, %427 : vector<16x128xf32>
    %431 = arith.addf %417, %430 : vector<16x128xf32>
    %c19_106 = arith.constant 19 : index
    %432 = memref.load %arg2[%c19_106] : memref<36xf32, #tpu.memory_space<smem>>
    %433 = vector.broadcast %432 : f32 to vector<16x128xf32>
    %434 = arith.mulf %433, %427 : vector<16x128xf32>
    %435 = arith.addf %421, %434 : vector<16x128xf32>
    %c31_107 = arith.constant 31 : index
    %436 = memref.load %arg2[%c31_107] : memref<36xf32, #tpu.memory_space<smem>>
    %437 = vector.broadcast %436 : f32 to vector<16x128xf32>
    %438 = arith.mulf %437, %427 : vector<16x128xf32>
    %439 = arith.addf %425, %438 : vector<16x128xf32>
    %c8_108 = arith.constant 8 : index
    %440 = memref.load %arg2[%c8_108] : memref<36xf32, #tpu.memory_space<smem>>
    %441 = vector.broadcast %440 : f32 to vector<16x128xf32>
    %442 = arith.mulf %441, %329 : vector<16x128xf32>
    %443 = arith.addf %431, %442 : vector<16x128xf32>
    %c20_109 = arith.constant 20 : index
    %444 = memref.load %arg2[%c20_109] : memref<36xf32, #tpu.memory_space<smem>>
    %445 = vector.broadcast %444 : f32 to vector<16x128xf32>
    %446 = arith.mulf %445, %329 : vector<16x128xf32>
    %447 = arith.addf %435, %446 : vector<16x128xf32>
    %c32_110 = arith.constant 32 : index
    %448 = memref.load %arg2[%c32_110] : memref<36xf32, #tpu.memory_space<smem>>
    %449 = vector.broadcast %448 : f32 to vector<16x128xf32>
    %450 = arith.mulf %449, %329 : vector<16x128xf32>
    %451 = arith.addf %439, %450 : vector<16x128xf32>
    %c127_i32_111 = arith.constant 127 : i32
    %452 = tpu.dynamic_rotate %329 by %c127_i32_111 dim 1 : vector<16x128xf32>, i32 -> vector<16x128xf32>
    %c9_112 = arith.constant 9 : index
    %453 = memref.load %arg2[%c9_112] : memref<36xf32, #tpu.memory_space<smem>>
    %454 = vector.broadcast %453 : f32 to vector<16x128xf32>
    %455 = arith.mulf %454, %452 : vector<16x128xf32>
    %456 = arith.addf %443, %455 : vector<16x128xf32>
    %c21_113 = arith.constant 21 : index
    %457 = memref.load %arg2[%c21_113] : memref<36xf32, #tpu.memory_space<smem>>
    %458 = vector.broadcast %457 : f32 to vector<16x128xf32>
    %459 = arith.mulf %458, %452 : vector<16x128xf32>
    %460 = arith.addf %447, %459 : vector<16x128xf32>
    %c33_114 = arith.constant 33 : index
    %461 = memref.load %arg2[%c33_114] : memref<36xf32, #tpu.memory_space<smem>>
    %462 = vector.broadcast %461 : f32 to vector<16x128xf32>
    %463 = arith.mulf %462, %452 : vector<16x128xf32>
    %464 = arith.addf %451, %463 : vector<16x128xf32>
    %c15_i32_115 = arith.constant 15 : i32
    %465 = tpu.dynamic_rotate %329 by %c15_i32_115 dim 0 : vector<16x128xf32>, i32 -> vector<16x128xf32>
    %c10_116 = arith.constant 10 : index
    %466 = memref.load %arg2[%c10_116] : memref<36xf32, #tpu.memory_space<smem>>
    %467 = vector.broadcast %466 : f32 to vector<16x128xf32>
    %468 = arith.mulf %467, %465 : vector<16x128xf32>
    %469 = arith.addf %456, %468 : vector<16x128xf32>
    %c22_117 = arith.constant 22 : index
    %470 = memref.load %arg2[%c22_117] : memref<36xf32, #tpu.memory_space<smem>>
    %471 = vector.broadcast %470 : f32 to vector<16x128xf32>
    %472 = arith.mulf %471, %465 : vector<16x128xf32>
    %473 = arith.addf %460, %472 : vector<16x128xf32>
    %c34_118 = arith.constant 34 : index
    %474 = memref.load %arg2[%c34_118] : memref<36xf32, #tpu.memory_space<smem>>
    %475 = vector.broadcast %474 : f32 to vector<16x128xf32>
    %476 = arith.mulf %475, %465 : vector<16x128xf32>
    %477 = arith.addf %464, %476 : vector<16x128xf32>
    %c15_i32_119 = arith.constant 15 : i32
    %478 = tpu.dynamic_rotate %329 by %c15_i32_119 dim 0 : vector<16x128xf32>, i32 -> vector<16x128xf32>
    %c127_i32_120 = arith.constant 127 : i32
    %479 = tpu.dynamic_rotate %478 by %c127_i32_120 dim 1 : vector<16x128xf32>, i32 -> vector<16x128xf32>
    %c11_121 = arith.constant 11 : index
    %480 = memref.load %arg2[%c11_121] : memref<36xf32, #tpu.memory_space<smem>>
    %481 = vector.broadcast %480 : f32 to vector<16x128xf32>
    %482 = arith.mulf %481, %479 : vector<16x128xf32>
    %483 = arith.addf %469, %482 : vector<16x128xf32>
    %c23_122 = arith.constant 23 : index
    %484 = memref.load %arg2[%c23_122] : memref<36xf32, #tpu.memory_space<smem>>
    %485 = vector.broadcast %484 : f32 to vector<16x128xf32>
    %486 = arith.mulf %485, %479 : vector<16x128xf32>
    %487 = arith.addf %473, %486 : vector<16x128xf32>
    %c35_123 = arith.constant 35 : index
    %488 = memref.load %arg2[%c35_123] : memref<36xf32, #tpu.memory_space<smem>>
    %489 = vector.broadcast %488 : f32 to vector<16x128xf32>
    %490 = arith.mulf %489, %479 : vector<16x128xf32>
    %491 = arith.addf %477, %490 : vector<16x128xf32>
    %c0_124 = arith.constant 0 : index
    %492 = memref.load %arg3[%c0_124] : memref<3xf32, #tpu.memory_space<smem>>
    %493 = vector.broadcast %492 : f32 to vector<16x128xf32>
    %c1_125 = arith.constant 1 : index
    %494 = memref.load %arg3[%c1_125] : memref<3xf32, #tpu.memory_space<smem>>
    %495 = vector.broadcast %494 : f32 to vector<16x128xf32>
    %c2_126 = arith.constant 2 : index
    %496 = memref.load %arg3[%c2_126] : memref<3xf32, #tpu.memory_space<smem>>
    %497 = vector.broadcast %496 : f32 to vector<16x128xf32>
    %c0_127 = arith.constant 0 : index
    %498 = memref.load %arg2[%c0_127] : memref<36xf32, #tpu.memory_space<smem>>
    %499 = vector.broadcast %498 : f32 to vector<16x128xf32>
    %500 = arith.mulf %499, %483 : vector<16x128xf32>
    %501 = arith.addf %493, %500 : vector<16x128xf32>
    %c12_128 = arith.constant 12 : index
    %502 = memref.load %arg2[%c12_128] : memref<36xf32, #tpu.memory_space<smem>>
    %503 = vector.broadcast %502 : f32 to vector<16x128xf32>
    %504 = arith.mulf %503, %483 : vector<16x128xf32>
    %505 = arith.addf %495, %504 : vector<16x128xf32>
    %c24_129 = arith.constant 24 : index
    %506 = memref.load %arg2[%c24_129] : memref<36xf32, #tpu.memory_space<smem>>
    %507 = vector.broadcast %506 : f32 to vector<16x128xf32>
    %508 = arith.mulf %507, %483 : vector<16x128xf32>
    %509 = arith.addf %497, %508 : vector<16x128xf32>
    %c127_i32_130 = arith.constant 127 : i32
    %510 = tpu.dynamic_rotate %483 by %c127_i32_130 dim 1 : vector<16x128xf32>, i32 -> vector<16x128xf32>
    %c1_131 = arith.constant 1 : index
    %511 = memref.load %arg2[%c1_131] : memref<36xf32, #tpu.memory_space<smem>>
    %512 = vector.broadcast %511 : f32 to vector<16x128xf32>
    %513 = arith.mulf %512, %510 : vector<16x128xf32>
    %514 = arith.addf %501, %513 : vector<16x128xf32>
    %c13_132 = arith.constant 13 : index
    %515 = memref.load %arg2[%c13_132] : memref<36xf32, #tpu.memory_space<smem>>
    %516 = vector.broadcast %515 : f32 to vector<16x128xf32>
    %517 = arith.mulf %516, %510 : vector<16x128xf32>
    %518 = arith.addf %505, %517 : vector<16x128xf32>
    %c25_133 = arith.constant 25 : index
    %519 = memref.load %arg2[%c25_133] : memref<36xf32, #tpu.memory_space<smem>>
    %520 = vector.broadcast %519 : f32 to vector<16x128xf32>
    %521 = arith.mulf %520, %510 : vector<16x128xf32>
    %522 = arith.addf %509, %521 : vector<16x128xf32>
    %c15_i32_134 = arith.constant 15 : i32
    %523 = tpu.dynamic_rotate %483 by %c15_i32_134 dim 0 : vector<16x128xf32>, i32 -> vector<16x128xf32>
    %c2_135 = arith.constant 2 : index
    %524 = memref.load %arg2[%c2_135] : memref<36xf32, #tpu.memory_space<smem>>
    %525 = vector.broadcast %524 : f32 to vector<16x128xf32>
    %526 = arith.mulf %525, %523 : vector<16x128xf32>
    %527 = arith.addf %514, %526 : vector<16x128xf32>
    %c14_136 = arith.constant 14 : index
    %528 = memref.load %arg2[%c14_136] : memref<36xf32, #tpu.memory_space<smem>>
    %529 = vector.broadcast %528 : f32 to vector<16x128xf32>
    %530 = arith.mulf %529, %523 : vector<16x128xf32>
    %531 = arith.addf %518, %530 : vector<16x128xf32>
    %c26_137 = arith.constant 26 : index
    %532 = memref.load %arg2[%c26_137] : memref<36xf32, #tpu.memory_space<smem>>
    %533 = vector.broadcast %532 : f32 to vector<16x128xf32>
    %534 = arith.mulf %533, %523 : vector<16x128xf32>
    %535 = arith.addf %522, %534 : vector<16x128xf32>
    %c15_i32_138 = arith.constant 15 : i32
    %536 = tpu.dynamic_rotate %483 by %c15_i32_138 dim 0 : vector<16x128xf32>, i32 -> vector<16x128xf32>
    %c127_i32_139 = arith.constant 127 : i32
    %537 = tpu.dynamic_rotate %536 by %c127_i32_139 dim 1 : vector<16x128xf32>, i32 -> vector<16x128xf32>
    %c3_140 = arith.constant 3 : index
    %538 = memref.load %arg2[%c3_140] : memref<36xf32, #tpu.memory_space<smem>>
    %539 = vector.broadcast %538 : f32 to vector<16x128xf32>
    %540 = arith.mulf %539, %537 : vector<16x128xf32>
    %541 = arith.addf %527, %540 : vector<16x128xf32>
    %c15_141 = arith.constant 15 : index
    %542 = memref.load %arg2[%c15_141] : memref<36xf32, #tpu.memory_space<smem>>
    %543 = vector.broadcast %542 : f32 to vector<16x128xf32>
    %544 = arith.mulf %543, %537 : vector<16x128xf32>
    %545 = arith.addf %531, %544 : vector<16x128xf32>
    %c27_142 = arith.constant 27 : index
    %546 = memref.load %arg2[%c27_142] : memref<36xf32, #tpu.memory_space<smem>>
    %547 = vector.broadcast %546 : f32 to vector<16x128xf32>
    %548 = arith.mulf %547, %537 : vector<16x128xf32>
    %549 = arith.addf %535, %548 : vector<16x128xf32>
    %c4_143 = arith.constant 4 : index
    %550 = memref.load %arg2[%c4_143] : memref<36xf32, #tpu.memory_space<smem>>
    %551 = vector.broadcast %550 : f32 to vector<16x128xf32>
    %552 = arith.mulf %551, %487 : vector<16x128xf32>
    %553 = arith.addf %541, %552 : vector<16x128xf32>
    %c16_144 = arith.constant 16 : index
    %554 = memref.load %arg2[%c16_144] : memref<36xf32, #tpu.memory_space<smem>>
    %555 = vector.broadcast %554 : f32 to vector<16x128xf32>
    %556 = arith.mulf %555, %487 : vector<16x128xf32>
    %557 = arith.addf %545, %556 : vector<16x128xf32>
    %c28_145 = arith.constant 28 : index
    %558 = memref.load %arg2[%c28_145] : memref<36xf32, #tpu.memory_space<smem>>
    %559 = vector.broadcast %558 : f32 to vector<16x128xf32>
    %560 = arith.mulf %559, %487 : vector<16x128xf32>
    %561 = arith.addf %549, %560 : vector<16x128xf32>
    %c127_i32_146 = arith.constant 127 : i32
    %562 = tpu.dynamic_rotate %487 by %c127_i32_146 dim 1 : vector<16x128xf32>, i32 -> vector<16x128xf32>
    %c5_147 = arith.constant 5 : index
    %563 = memref.load %arg2[%c5_147] : memref<36xf32, #tpu.memory_space<smem>>
    %564 = vector.broadcast %563 : f32 to vector<16x128xf32>
    %565 = arith.mulf %564, %562 : vector<16x128xf32>
    %566 = arith.addf %553, %565 : vector<16x128xf32>
    %c17_148 = arith.constant 17 : index
    %567 = memref.load %arg2[%c17_148] : memref<36xf32, #tpu.memory_space<smem>>
    %568 = vector.broadcast %567 : f32 to vector<16x128xf32>
    %569 = arith.mulf %568, %562 : vector<16x128xf32>
    %570 = arith.addf %557, %569 : vector<16x128xf32>
    %c29_149 = arith.constant 29 : index
    %571 = memref.load %arg2[%c29_149] : memref<36xf32, #tpu.memory_space<smem>>
    %572 = vector.broadcast %571 : f32 to vector<16x128xf32>
    %573 = arith.mulf %572, %562 : vector<16x128xf32>
    %574 = arith.addf %561, %573 : vector<16x128xf32>
    %c15_i32_150 = arith.constant 15 : i32
    %575 = tpu.dynamic_rotate %487 by %c15_i32_150 dim 0 : vector<16x128xf32>, i32 -> vector<16x128xf32>
    %c6_151 = arith.constant 6 : index
    %576 = memref.load %arg2[%c6_151] : memref<36xf32, #tpu.memory_space<smem>>
    %577 = vector.broadcast %576 : f32 to vector<16x128xf32>
    %578 = arith.mulf %577, %575 : vector<16x128xf32>
    %579 = arith.addf %566, %578 : vector<16x128xf32>
    %c18_152 = arith.constant 18 : index
    %580 = memref.load %arg2[%c18_152] : memref<36xf32, #tpu.memory_space<smem>>
    %581 = vector.broadcast %580 : f32 to vector<16x128xf32>
    %582 = arith.mulf %581, %575 : vector<16x128xf32>
    %583 = arith.addf %570, %582 : vector<16x128xf32>
    %c30_153 = arith.constant 30 : index
    %584 = memref.load %arg2[%c30_153] : memref<36xf32, #tpu.memory_space<smem>>
    %585 = vector.broadcast %584 : f32 to vector<16x128xf32>
    %586 = arith.mulf %585, %575 : vector<16x128xf32>
    %587 = arith.addf %574, %586 : vector<16x128xf32>
    %c15_i32_154 = arith.constant 15 : i32
    %588 = tpu.dynamic_rotate %487 by %c15_i32_154 dim 0 : vector<16x128xf32>, i32 -> vector<16x128xf32>
    %c127_i32_155 = arith.constant 127 : i32
    %589 = tpu.dynamic_rotate %588 by %c127_i32_155 dim 1 : vector<16x128xf32>, i32 -> vector<16x128xf32>
    %c7_156 = arith.constant 7 : index
    %590 = memref.load %arg2[%c7_156] : memref<36xf32, #tpu.memory_space<smem>>
    %591 = vector.broadcast %590 : f32 to vector<16x128xf32>
    %592 = arith.mulf %591, %589 : vector<16x128xf32>
    %593 = arith.addf %579, %592 : vector<16x128xf32>
    %c19_157 = arith.constant 19 : index
    %594 = memref.load %arg2[%c19_157] : memref<36xf32, #tpu.memory_space<smem>>
    %595 = vector.broadcast %594 : f32 to vector<16x128xf32>
    %596 = arith.mulf %595, %589 : vector<16x128xf32>
    %597 = arith.addf %583, %596 : vector<16x128xf32>
    %c31_158 = arith.constant 31 : index
    %598 = memref.load %arg2[%c31_158] : memref<36xf32, #tpu.memory_space<smem>>
    %599 = vector.broadcast %598 : f32 to vector<16x128xf32>
    %600 = arith.mulf %599, %589 : vector<16x128xf32>
    %601 = arith.addf %587, %600 : vector<16x128xf32>
    %c8_159 = arith.constant 8 : index
    %602 = memref.load %arg2[%c8_159] : memref<36xf32, #tpu.memory_space<smem>>
    %603 = vector.broadcast %602 : f32 to vector<16x128xf32>
    %604 = arith.mulf %603, %491 : vector<16x128xf32>
    %605 = arith.addf %593, %604 : vector<16x128xf32>
    %c20_160 = arith.constant 20 : index
    %606 = memref.load %arg2[%c20_160] : memref<36xf32, #tpu.memory_space<smem>>
    %607 = vector.broadcast %606 : f32 to vector<16x128xf32>
    %608 = arith.mulf %607, %491 : vector<16x128xf32>
    %609 = arith.addf %597, %608 : vector<16x128xf32>
    %c32_161 = arith.constant 32 : index
    %610 = memref.load %arg2[%c32_161] : memref<36xf32, #tpu.memory_space<smem>>
    %611 = vector.broadcast %610 : f32 to vector<16x128xf32>
    %612 = arith.mulf %611, %491 : vector<16x128xf32>
    %613 = arith.addf %601, %612 : vector<16x128xf32>
    %c127_i32_162 = arith.constant 127 : i32
    %614 = tpu.dynamic_rotate %491 by %c127_i32_162 dim 1 : vector<16x128xf32>, i32 -> vector<16x128xf32>
    %c9_163 = arith.constant 9 : index
    %615 = memref.load %arg2[%c9_163] : memref<36xf32, #tpu.memory_space<smem>>
    %616 = vector.broadcast %615 : f32 to vector<16x128xf32>
    %617 = arith.mulf %616, %614 : vector<16x128xf32>
    %618 = arith.addf %605, %617 : vector<16x128xf32>
    %c21_164 = arith.constant 21 : index
    %619 = memref.load %arg2[%c21_164] : memref<36xf32, #tpu.memory_space<smem>>
    %620 = vector.broadcast %619 : f32 to vector<16x128xf32>
    %621 = arith.mulf %620, %614 : vector<16x128xf32>
    %622 = arith.addf %609, %621 : vector<16x128xf32>
    %c33_165 = arith.constant 33 : index
    %623 = memref.load %arg2[%c33_165] : memref<36xf32, #tpu.memory_space<smem>>
    %624 = vector.broadcast %623 : f32 to vector<16x128xf32>
    %625 = arith.mulf %624, %614 : vector<16x128xf32>
    %626 = arith.addf %613, %625 : vector<16x128xf32>
    %c15_i32_166 = arith.constant 15 : i32
    %627 = tpu.dynamic_rotate %491 by %c15_i32_166 dim 0 : vector<16x128xf32>, i32 -> vector<16x128xf32>
    %c10_167 = arith.constant 10 : index
    %628 = memref.load %arg2[%c10_167] : memref<36xf32, #tpu.memory_space<smem>>
    %629 = vector.broadcast %628 : f32 to vector<16x128xf32>
    %630 = arith.mulf %629, %627 : vector<16x128xf32>
    %631 = arith.addf %618, %630 : vector<16x128xf32>
    %c22_168 = arith.constant 22 : index
    %632 = memref.load %arg2[%c22_168] : memref<36xf32, #tpu.memory_space<smem>>
    %633 = vector.broadcast %632 : f32 to vector<16x128xf32>
    %634 = arith.mulf %633, %627 : vector<16x128xf32>
    %635 = arith.addf %622, %634 : vector<16x128xf32>
    %c34_169 = arith.constant 34 : index
    %636 = memref.load %arg2[%c34_169] : memref<36xf32, #tpu.memory_space<smem>>
    %637 = vector.broadcast %636 : f32 to vector<16x128xf32>
    %638 = arith.mulf %637, %627 : vector<16x128xf32>
    %639 = arith.addf %626, %638 : vector<16x128xf32>
    %c15_i32_170 = arith.constant 15 : i32
    %640 = tpu.dynamic_rotate %491 by %c15_i32_170 dim 0 : vector<16x128xf32>, i32 -> vector<16x128xf32>
    %c127_i32_171 = arith.constant 127 : i32
    %641 = tpu.dynamic_rotate %640 by %c127_i32_171 dim 1 : vector<16x128xf32>, i32 -> vector<16x128xf32>
    %c11_172 = arith.constant 11 : index
    %642 = memref.load %arg2[%c11_172] : memref<36xf32, #tpu.memory_space<smem>>
    %643 = vector.broadcast %642 : f32 to vector<16x128xf32>
    %644 = arith.mulf %643, %641 : vector<16x128xf32>
    %645 = arith.addf %631, %644 : vector<16x128xf32>
    %c23_173 = arith.constant 23 : index
    %646 = memref.load %arg2[%c23_173] : memref<36xf32, #tpu.memory_space<smem>>
    %647 = vector.broadcast %646 : f32 to vector<16x128xf32>
    %648 = arith.mulf %647, %641 : vector<16x128xf32>
    %649 = arith.addf %635, %648 : vector<16x128xf32>
    %c35_174 = arith.constant 35 : index
    %650 = memref.load %arg2[%c35_174] : memref<36xf32, #tpu.memory_space<smem>>
    %651 = vector.broadcast %650 : f32 to vector<16x128xf32>
    %652 = arith.mulf %651, %641 : vector<16x128xf32>
    %653 = arith.addf %639, %652 : vector<16x128xf32>
    %c0_175 = arith.constant 0 : index
    %654 = memref.load %arg3[%c0_175] : memref<3xf32, #tpu.memory_space<smem>>
    %655 = vector.broadcast %654 : f32 to vector<16x128xf32>
    %c1_176 = arith.constant 1 : index
    %656 = memref.load %arg3[%c1_176] : memref<3xf32, #tpu.memory_space<smem>>
    %657 = vector.broadcast %656 : f32 to vector<16x128xf32>
    %c2_177 = arith.constant 2 : index
    %658 = memref.load %arg3[%c2_177] : memref<3xf32, #tpu.memory_space<smem>>
    %659 = vector.broadcast %658 : f32 to vector<16x128xf32>
    %c0_178 = arith.constant 0 : index
    %660 = memref.load %arg0[%c0_178] : memref<36xf32, #tpu.memory_space<smem>>
    %661 = vector.broadcast %660 : f32 to vector<16x128xf32>
    %662 = arith.mulf %661, %645 : vector<16x128xf32>
    %663 = arith.addf %655, %662 : vector<16x128xf32>
    %c12_179 = arith.constant 12 : index
    %664 = memref.load %arg0[%c12_179] : memref<36xf32, #tpu.memory_space<smem>>
    %665 = vector.broadcast %664 : f32 to vector<16x128xf32>
    %666 = arith.mulf %665, %645 : vector<16x128xf32>
    %667 = arith.addf %657, %666 : vector<16x128xf32>
    %c24_180 = arith.constant 24 : index
    %668 = memref.load %arg0[%c24_180] : memref<36xf32, #tpu.memory_space<smem>>
    %669 = vector.broadcast %668 : f32 to vector<16x128xf32>
    %670 = arith.mulf %669, %645 : vector<16x128xf32>
    %671 = arith.addf %659, %670 : vector<16x128xf32>
    %c127_i32_181 = arith.constant 127 : i32
    %672 = tpu.dynamic_rotate %645 by %c127_i32_181 dim 1 : vector<16x128xf32>, i32 -> vector<16x128xf32>
    %c1_182 = arith.constant 1 : index
    %673 = memref.load %arg0[%c1_182] : memref<36xf32, #tpu.memory_space<smem>>
    %674 = vector.broadcast %673 : f32 to vector<16x128xf32>
    %675 = arith.mulf %674, %672 : vector<16x128xf32>
    %676 = arith.addf %663, %675 : vector<16x128xf32>
    %c13_183 = arith.constant 13 : index
    %677 = memref.load %arg0[%c13_183] : memref<36xf32, #tpu.memory_space<smem>>
    %678 = vector.broadcast %677 : f32 to vector<16x128xf32>
    %679 = arith.mulf %678, %672 : vector<16x128xf32>
    %680 = arith.addf %667, %679 : vector<16x128xf32>
    %c25_184 = arith.constant 25 : index
    %681 = memref.load %arg0[%c25_184] : memref<36xf32, #tpu.memory_space<smem>>
    %682 = vector.broadcast %681 : f32 to vector<16x128xf32>
    %683 = arith.mulf %682, %672 : vector<16x128xf32>
    %684 = arith.addf %671, %683 : vector<16x128xf32>
    %c15_i32_185 = arith.constant 15 : i32
    %685 = tpu.dynamic_rotate %645 by %c15_i32_185 dim 0 : vector<16x128xf32>, i32 -> vector<16x128xf32>
    %c2_186 = arith.constant 2 : index
    %686 = memref.load %arg0[%c2_186] : memref<36xf32, #tpu.memory_space<smem>>
    %687 = vector.broadcast %686 : f32 to vector<16x128xf32>
    %688 = arith.mulf %687, %685 : vector<16x128xf32>
    %689 = arith.addf %676, %688 : vector<16x128xf32>
    %c14_187 = arith.constant 14 : index
    %690 = memref.load %arg0[%c14_187] : memref<36xf32, #tpu.memory_space<smem>>
    %691 = vector.broadcast %690 : f32 to vector<16x128xf32>
    %692 = arith.mulf %691, %685 : vector<16x128xf32>
    %693 = arith.addf %680, %692 : vector<16x128xf32>
    %c26_188 = arith.constant 26 : index
    %694 = memref.load %arg0[%c26_188] : memref<36xf32, #tpu.memory_space<smem>>
    %695 = vector.broadcast %694 : f32 to vector<16x128xf32>
    %696 = arith.mulf %695, %685 : vector<16x128xf32>
    %697 = arith.addf %684, %696 : vector<16x128xf32>
    %c15_i32_189 = arith.constant 15 : i32
    %698 = tpu.dynamic_rotate %645 by %c15_i32_189 dim 0 : vector<16x128xf32>, i32 -> vector<16x128xf32>
    %c127_i32_190 = arith.constant 127 : i32
    %699 = tpu.dynamic_rotate %698 by %c127_i32_190 dim 1 : vector<16x128xf32>, i32 -> vector<16x128xf32>
    %c3_191 = arith.constant 3 : index
    %700 = memref.load %arg0[%c3_191] : memref<36xf32, #tpu.memory_space<smem>>
    %701 = vector.broadcast %700 : f32 to vector<16x128xf32>
    %702 = arith.mulf %701, %699 : vector<16x128xf32>
    %703 = arith.addf %689, %702 : vector<16x128xf32>
    %c15_192 = arith.constant 15 : index
    %704 = memref.load %arg0[%c15_192] : memref<36xf32, #tpu.memory_space<smem>>
    %705 = vector.broadcast %704 : f32 to vector<16x128xf32>
    %706 = arith.mulf %705, %699 : vector<16x128xf32>
    %707 = arith.addf %693, %706 : vector<16x128xf32>
    %c27_193 = arith.constant 27 : index
    %708 = memref.load %arg0[%c27_193] : memref<36xf32, #tpu.memory_space<smem>>
    %709 = vector.broadcast %708 : f32 to vector<16x128xf32>
    %710 = arith.mulf %709, %699 : vector<16x128xf32>
    %711 = arith.addf %697, %710 : vector<16x128xf32>
    %c4_194 = arith.constant 4 : index
    %712 = memref.load %arg0[%c4_194] : memref<36xf32, #tpu.memory_space<smem>>
    %713 = vector.broadcast %712 : f32 to vector<16x128xf32>
    %714 = arith.mulf %713, %649 : vector<16x128xf32>
    %715 = arith.addf %703, %714 : vector<16x128xf32>
    %c16_195 = arith.constant 16 : index
    %716 = memref.load %arg0[%c16_195] : memref<36xf32, #tpu.memory_space<smem>>
    %717 = vector.broadcast %716 : f32 to vector<16x128xf32>
    %718 = arith.mulf %717, %649 : vector<16x128xf32>
    %719 = arith.addf %707, %718 : vector<16x128xf32>
    %c28_196 = arith.constant 28 : index
    %720 = memref.load %arg0[%c28_196] : memref<36xf32, #tpu.memory_space<smem>>
    %721 = vector.broadcast %720 : f32 to vector<16x128xf32>
    %722 = arith.mulf %721, %649 : vector<16x128xf32>
    %723 = arith.addf %711, %722 : vector<16x128xf32>
    %c127_i32_197 = arith.constant 127 : i32
    %724 = tpu.dynamic_rotate %649 by %c127_i32_197 dim 1 : vector<16x128xf32>, i32 -> vector<16x128xf32>
    %c5_198 = arith.constant 5 : index
    %725 = memref.load %arg0[%c5_198] : memref<36xf32, #tpu.memory_space<smem>>
    %726 = vector.broadcast %725 : f32 to vector<16x128xf32>
    %727 = arith.mulf %726, %724 : vector<16x128xf32>
    %728 = arith.addf %715, %727 : vector<16x128xf32>
    %c17_199 = arith.constant 17 : index
    %729 = memref.load %arg0[%c17_199] : memref<36xf32, #tpu.memory_space<smem>>
    %730 = vector.broadcast %729 : f32 to vector<16x128xf32>
    %731 = arith.mulf %730, %724 : vector<16x128xf32>
    %732 = arith.addf %719, %731 : vector<16x128xf32>
    %c29_200 = arith.constant 29 : index
    %733 = memref.load %arg0[%c29_200] : memref<36xf32, #tpu.memory_space<smem>>
    %734 = vector.broadcast %733 : f32 to vector<16x128xf32>
    %735 = arith.mulf %734, %724 : vector<16x128xf32>
    %736 = arith.addf %723, %735 : vector<16x128xf32>
    %c15_i32_201 = arith.constant 15 : i32
    %737 = tpu.dynamic_rotate %649 by %c15_i32_201 dim 0 : vector<16x128xf32>, i32 -> vector<16x128xf32>
    %c6_202 = arith.constant 6 : index
    %738 = memref.load %arg0[%c6_202] : memref<36xf32, #tpu.memory_space<smem>>
    %739 = vector.broadcast %738 : f32 to vector<16x128xf32>
    %740 = arith.mulf %739, %737 : vector<16x128xf32>
    %741 = arith.addf %728, %740 : vector<16x128xf32>
    %c18_203 = arith.constant 18 : index
    %742 = memref.load %arg0[%c18_203] : memref<36xf32, #tpu.memory_space<smem>>
    %743 = vector.broadcast %742 : f32 to vector<16x128xf32>
    %744 = arith.mulf %743, %737 : vector<16x128xf32>
    %745 = arith.addf %732, %744 : vector<16x128xf32>
    %c30_204 = arith.constant 30 : index
    %746 = memref.load %arg0[%c30_204] : memref<36xf32, #tpu.memory_space<smem>>
    %747 = vector.broadcast %746 : f32 to vector<16x128xf32>
    %748 = arith.mulf %747, %737 : vector<16x128xf32>
    %749 = arith.addf %736, %748 : vector<16x128xf32>
    %c15_i32_205 = arith.constant 15 : i32
    %750 = tpu.dynamic_rotate %649 by %c15_i32_205 dim 0 : vector<16x128xf32>, i32 -> vector<16x128xf32>
    %c127_i32_206 = arith.constant 127 : i32
    %751 = tpu.dynamic_rotate %750 by %c127_i32_206 dim 1 : vector<16x128xf32>, i32 -> vector<16x128xf32>
    %c7_207 = arith.constant 7 : index
    %752 = memref.load %arg0[%c7_207] : memref<36xf32, #tpu.memory_space<smem>>
    %753 = vector.broadcast %752 : f32 to vector<16x128xf32>
    %754 = arith.mulf %753, %751 : vector<16x128xf32>
    %755 = arith.addf %741, %754 : vector<16x128xf32>
    %c19_208 = arith.constant 19 : index
    %756 = memref.load %arg0[%c19_208] : memref<36xf32, #tpu.memory_space<smem>>
    %757 = vector.broadcast %756 : f32 to vector<16x128xf32>
    %758 = arith.mulf %757, %751 : vector<16x128xf32>
    %759 = arith.addf %745, %758 : vector<16x128xf32>
    %c31_209 = arith.constant 31 : index
    %760 = memref.load %arg0[%c31_209] : memref<36xf32, #tpu.memory_space<smem>>
    %761 = vector.broadcast %760 : f32 to vector<16x128xf32>
    %762 = arith.mulf %761, %751 : vector<16x128xf32>
    %763 = arith.addf %749, %762 : vector<16x128xf32>
    %c8_210 = arith.constant 8 : index
    %764 = memref.load %arg0[%c8_210] : memref<36xf32, #tpu.memory_space<smem>>
    %765 = vector.broadcast %764 : f32 to vector<16x128xf32>
    %766 = arith.mulf %765, %653 : vector<16x128xf32>
    %767 = arith.addf %755, %766 : vector<16x128xf32>
    %c20_211 = arith.constant 20 : index
    %768 = memref.load %arg0[%c20_211] : memref<36xf32, #tpu.memory_space<smem>>
    %769 = vector.broadcast %768 : f32 to vector<16x128xf32>
    %770 = arith.mulf %769, %653 : vector<16x128xf32>
    %771 = arith.addf %759, %770 : vector<16x128xf32>
    %c32_212 = arith.constant 32 : index
    %772 = memref.load %arg0[%c32_212] : memref<36xf32, #tpu.memory_space<smem>>
    %773 = vector.broadcast %772 : f32 to vector<16x128xf32>
    %774 = arith.mulf %773, %653 : vector<16x128xf32>
    %775 = arith.addf %763, %774 : vector<16x128xf32>
    %c127_i32_213 = arith.constant 127 : i32
    %776 = tpu.dynamic_rotate %653 by %c127_i32_213 dim 1 : vector<16x128xf32>, i32 -> vector<16x128xf32>
    %c9_214 = arith.constant 9 : index
    %777 = memref.load %arg0[%c9_214] : memref<36xf32, #tpu.memory_space<smem>>
    %778 = vector.broadcast %777 : f32 to vector<16x128xf32>
    %779 = arith.mulf %778, %776 : vector<16x128xf32>
    %780 = arith.addf %767, %779 : vector<16x128xf32>
    %c21_215 = arith.constant 21 : index
    %781 = memref.load %arg0[%c21_215] : memref<36xf32, #tpu.memory_space<smem>>
    %782 = vector.broadcast %781 : f32 to vector<16x128xf32>
    %783 = arith.mulf %782, %776 : vector<16x128xf32>
    %784 = arith.addf %771, %783 : vector<16x128xf32>
    %c33_216 = arith.constant 33 : index
    %785 = memref.load %arg0[%c33_216] : memref<36xf32, #tpu.memory_space<smem>>
    %786 = vector.broadcast %785 : f32 to vector<16x128xf32>
    %787 = arith.mulf %786, %776 : vector<16x128xf32>
    %788 = arith.addf %775, %787 : vector<16x128xf32>
    %c15_i32_217 = arith.constant 15 : i32
    %789 = tpu.dynamic_rotate %653 by %c15_i32_217 dim 0 : vector<16x128xf32>, i32 -> vector<16x128xf32>
    %c10_218 = arith.constant 10 : index
    %790 = memref.load %arg0[%c10_218] : memref<36xf32, #tpu.memory_space<smem>>
    %791 = vector.broadcast %790 : f32 to vector<16x128xf32>
    %792 = arith.mulf %791, %789 : vector<16x128xf32>
    %793 = arith.addf %780, %792 : vector<16x128xf32>
    %c22_219 = arith.constant 22 : index
    %794 = memref.load %arg0[%c22_219] : memref<36xf32, #tpu.memory_space<smem>>
    %795 = vector.broadcast %794 : f32 to vector<16x128xf32>
    %796 = arith.mulf %795, %789 : vector<16x128xf32>
    %797 = arith.addf %784, %796 : vector<16x128xf32>
    %c34_220 = arith.constant 34 : index
    %798 = memref.load %arg0[%c34_220] : memref<36xf32, #tpu.memory_space<smem>>
    %799 = vector.broadcast %798 : f32 to vector<16x128xf32>
    %800 = arith.mulf %799, %789 : vector<16x128xf32>
    %801 = arith.addf %788, %800 : vector<16x128xf32>
    %c15_i32_221 = arith.constant 15 : i32
    %802 = tpu.dynamic_rotate %653 by %c15_i32_221 dim 0 : vector<16x128xf32>, i32 -> vector<16x128xf32>
    %c127_i32_222 = arith.constant 127 : i32
    %803 = tpu.dynamic_rotate %802 by %c127_i32_222 dim 1 : vector<16x128xf32>, i32 -> vector<16x128xf32>
    %c11_223 = arith.constant 11 : index
    %804 = memref.load %arg0[%c11_223] : memref<36xf32, #tpu.memory_space<smem>>
    %805 = vector.broadcast %804 : f32 to vector<16x128xf32>
    %806 = arith.mulf %805, %803 : vector<16x128xf32>
    %807 = arith.addf %793, %806 : vector<16x128xf32>
    %c23_224 = arith.constant 23 : index
    %808 = memref.load %arg0[%c23_224] : memref<36xf32, #tpu.memory_space<smem>>
    %809 = vector.broadcast %808 : f32 to vector<16x128xf32>
    %810 = arith.mulf %809, %803 : vector<16x128xf32>
    %811 = arith.addf %797, %810 : vector<16x128xf32>
    %c35_225 = arith.constant 35 : index
    %812 = memref.load %arg0[%c35_225] : memref<36xf32, #tpu.memory_space<smem>>
    %813 = vector.broadcast %812 : f32 to vector<16x128xf32>
    %814 = arith.mulf %813, %803 : vector<16x128xf32>
    %815 = arith.addf %801, %814 : vector<16x128xf32>
    %c0_226 = arith.constant 0 : index
    %816 = memref.load %arg1[%c0_226] : memref<3xf32, #tpu.memory_space<smem>>
    %817 = vector.broadcast %816 : f32 to vector<16x128xf32>
    %c1_227 = arith.constant 1 : index
    %818 = memref.load %arg1[%c1_227] : memref<3xf32, #tpu.memory_space<smem>>
    %819 = vector.broadcast %818 : f32 to vector<16x128xf32>
    %c2_228 = arith.constant 2 : index
    %820 = memref.load %arg1[%c2_228] : memref<3xf32, #tpu.memory_space<smem>>
    %821 = vector.broadcast %820 : f32 to vector<16x128xf32>
    %c0_229 = arith.constant 0 : index
    %822 = memref.load %arg2[%c0_229] : memref<36xf32, #tpu.memory_space<smem>>
    %823 = vector.broadcast %822 : f32 to vector<16x128xf32>
    %824 = arith.mulf %823, %807 : vector<16x128xf32>
    %825 = arith.addf %817, %824 : vector<16x128xf32>
    %c12_230 = arith.constant 12 : index
    %826 = memref.load %arg2[%c12_230] : memref<36xf32, #tpu.memory_space<smem>>
    %827 = vector.broadcast %826 : f32 to vector<16x128xf32>
    %828 = arith.mulf %827, %807 : vector<16x128xf32>
    %829 = arith.addf %819, %828 : vector<16x128xf32>
    %c24_231 = arith.constant 24 : index
    %830 = memref.load %arg2[%c24_231] : memref<36xf32, #tpu.memory_space<smem>>
    %831 = vector.broadcast %830 : f32 to vector<16x128xf32>
    %832 = arith.mulf %831, %807 : vector<16x128xf32>
    %833 = arith.addf %821, %832 : vector<16x128xf32>
    %c127_i32_232 = arith.constant 127 : i32
    %834 = tpu.dynamic_rotate %807 by %c127_i32_232 dim 1 : vector<16x128xf32>, i32 -> vector<16x128xf32>
    %c1_233 = arith.constant 1 : index
    %835 = memref.load %arg2[%c1_233] : memref<36xf32, #tpu.memory_space<smem>>
    %836 = vector.broadcast %835 : f32 to vector<16x128xf32>
    %837 = arith.mulf %836, %834 : vector<16x128xf32>
    %838 = arith.addf %825, %837 : vector<16x128xf32>
    %c13_234 = arith.constant 13 : index
    %839 = memref.load %arg2[%c13_234] : memref<36xf32, #tpu.memory_space<smem>>
    %840 = vector.broadcast %839 : f32 to vector<16x128xf32>
    %841 = arith.mulf %840, %834 : vector<16x128xf32>
    %842 = arith.addf %829, %841 : vector<16x128xf32>
    %c25_235 = arith.constant 25 : index
    %843 = memref.load %arg2[%c25_235] : memref<36xf32, #tpu.memory_space<smem>>
    %844 = vector.broadcast %843 : f32 to vector<16x128xf32>
    %845 = arith.mulf %844, %834 : vector<16x128xf32>
    %846 = arith.addf %833, %845 : vector<16x128xf32>
    %c15_i32_236 = arith.constant 15 : i32
    %847 = tpu.dynamic_rotate %807 by %c15_i32_236 dim 0 : vector<16x128xf32>, i32 -> vector<16x128xf32>
    %c2_237 = arith.constant 2 : index
    %848 = memref.load %arg2[%c2_237] : memref<36xf32, #tpu.memory_space<smem>>
    %849 = vector.broadcast %848 : f32 to vector<16x128xf32>
    %850 = arith.mulf %849, %847 : vector<16x128xf32>
    %851 = arith.addf %838, %850 : vector<16x128xf32>
    %c14_238 = arith.constant 14 : index
    %852 = memref.load %arg2[%c14_238] : memref<36xf32, #tpu.memory_space<smem>>
    %853 = vector.broadcast %852 : f32 to vector<16x128xf32>
    %854 = arith.mulf %853, %847 : vector<16x128xf32>
    %855 = arith.addf %842, %854 : vector<16x128xf32>
    %c26_239 = arith.constant 26 : index
    %856 = memref.load %arg2[%c26_239] : memref<36xf32, #tpu.memory_space<smem>>
    %857 = vector.broadcast %856 : f32 to vector<16x128xf32>
    %858 = arith.mulf %857, %847 : vector<16x128xf32>
    %859 = arith.addf %846, %858 : vector<16x128xf32>
    %c15_i32_240 = arith.constant 15 : i32
    %860 = tpu.dynamic_rotate %807 by %c15_i32_240 dim 0 : vector<16x128xf32>, i32 -> vector<16x128xf32>
    %c127_i32_241 = arith.constant 127 : i32
    %861 = tpu.dynamic_rotate %860 by %c127_i32_241 dim 1 : vector<16x128xf32>, i32 -> vector<16x128xf32>
    %c3_242 = arith.constant 3 : index
    %862 = memref.load %arg2[%c3_242] : memref<36xf32, #tpu.memory_space<smem>>
    %863 = vector.broadcast %862 : f32 to vector<16x128xf32>
    %864 = arith.mulf %863, %861 : vector<16x128xf32>
    %865 = arith.addf %851, %864 : vector<16x128xf32>
    %c15_243 = arith.constant 15 : index
    %866 = memref.load %arg2[%c15_243] : memref<36xf32, #tpu.memory_space<smem>>
    %867 = vector.broadcast %866 : f32 to vector<16x128xf32>
    %868 = arith.mulf %867, %861 : vector<16x128xf32>
    %869 = arith.addf %855, %868 : vector<16x128xf32>
    %c27_244 = arith.constant 27 : index
    %870 = memref.load %arg2[%c27_244] : memref<36xf32, #tpu.memory_space<smem>>
    %871 = vector.broadcast %870 : f32 to vector<16x128xf32>
    %872 = arith.mulf %871, %861 : vector<16x128xf32>
    %873 = arith.addf %859, %872 : vector<16x128xf32>
    %c4_245 = arith.constant 4 : index
    %874 = memref.load %arg2[%c4_245] : memref<36xf32, #tpu.memory_space<smem>>
    %875 = vector.broadcast %874 : f32 to vector<16x128xf32>
    %876 = arith.mulf %875, %811 : vector<16x128xf32>
    %877 = arith.addf %865, %876 : vector<16x128xf32>
    %c16_246 = arith.constant 16 : index
    %878 = memref.load %arg2[%c16_246] : memref<36xf32, #tpu.memory_space<smem>>
    %879 = vector.broadcast %878 : f32 to vector<16x128xf32>
    %880 = arith.mulf %879, %811 : vector<16x128xf32>
    %881 = arith.addf %869, %880 : vector<16x128xf32>
    %c28_247 = arith.constant 28 : index
    %882 = memref.load %arg2[%c28_247] : memref<36xf32, #tpu.memory_space<smem>>
    %883 = vector.broadcast %882 : f32 to vector<16x128xf32>
    %884 = arith.mulf %883, %811 : vector<16x128xf32>
    %885 = arith.addf %873, %884 : vector<16x128xf32>
    %c127_i32_248 = arith.constant 127 : i32
    %886 = tpu.dynamic_rotate %811 by %c127_i32_248 dim 1 : vector<16x128xf32>, i32 -> vector<16x128xf32>
    %c5_249 = arith.constant 5 : index
    %887 = memref.load %arg2[%c5_249] : memref<36xf32, #tpu.memory_space<smem>>
    %888 = vector.broadcast %887 : f32 to vector<16x128xf32>
    %889 = arith.mulf %888, %886 : vector<16x128xf32>
    %890 = arith.addf %877, %889 : vector<16x128xf32>
    %c17_250 = arith.constant 17 : index
    %891 = memref.load %arg2[%c17_250] : memref<36xf32, #tpu.memory_space<smem>>
    %892 = vector.broadcast %891 : f32 to vector<16x128xf32>
    %893 = arith.mulf %892, %886 : vector<16x128xf32>
    %894 = arith.addf %881, %893 : vector<16x128xf32>
    %c29_251 = arith.constant 29 : index
    %895 = memref.load %arg2[%c29_251] : memref<36xf32, #tpu.memory_space<smem>>
    %896 = vector.broadcast %895 : f32 to vector<16x128xf32>
    %897 = arith.mulf %896, %886 : vector<16x128xf32>
    %898 = arith.addf %885, %897 : vector<16x128xf32>
    %c15_i32_252 = arith.constant 15 : i32
    %899 = tpu.dynamic_rotate %811 by %c15_i32_252 dim 0 : vector<16x128xf32>, i32 -> vector<16x128xf32>
    %c6_253 = arith.constant 6 : index
    %900 = memref.load %arg2[%c6_253] : memref<36xf32, #tpu.memory_space<smem>>
    %901 = vector.broadcast %900 : f32 to vector<16x128xf32>
    %902 = arith.mulf %901, %899 : vector<16x128xf32>
    %903 = arith.addf %890, %902 : vector<16x128xf32>
    %c18_254 = arith.constant 18 : index
    %904 = memref.load %arg2[%c18_254] : memref<36xf32, #tpu.memory_space<smem>>
    %905 = vector.broadcast %904 : f32 to vector<16x128xf32>
    %906 = arith.mulf %905, %899 : vector<16x128xf32>
    %907 = arith.addf %894, %906 : vector<16x128xf32>
    %c30_255 = arith.constant 30 : index
    %908 = memref.load %arg2[%c30_255] : memref<36xf32, #tpu.memory_space<smem>>
    %909 = vector.broadcast %908 : f32 to vector<16x128xf32>
    %910 = arith.mulf %909, %899 : vector<16x128xf32>
    %911 = arith.addf %898, %910 : vector<16x128xf32>
    %c15_i32_256 = arith.constant 15 : i32
    %912 = tpu.dynamic_rotate %811 by %c15_i32_256 dim 0 : vector<16x128xf32>, i32 -> vector<16x128xf32>
    %c127_i32_257 = arith.constant 127 : i32
    %913 = tpu.dynamic_rotate %912 by %c127_i32_257 dim 1 : vector<16x128xf32>, i32 -> vector<16x128xf32>
    %c7_258 = arith.constant 7 : index
    %914 = memref.load %arg2[%c7_258] : memref<36xf32, #tpu.memory_space<smem>>
    %915 = vector.broadcast %914 : f32 to vector<16x128xf32>
    %916 = arith.mulf %915, %913 : vector<16x128xf32>
    %917 = arith.addf %903, %916 : vector<16x128xf32>
    %c19_259 = arith.constant 19 : index
    %918 = memref.load %arg2[%c19_259] : memref<36xf32, #tpu.memory_space<smem>>
    %919 = vector.broadcast %918 : f32 to vector<16x128xf32>
    %920 = arith.mulf %919, %913 : vector<16x128xf32>
    %921 = arith.addf %907, %920 : vector<16x128xf32>
    %c31_260 = arith.constant 31 : index
    %922 = memref.load %arg2[%c31_260] : memref<36xf32, #tpu.memory_space<smem>>
    %923 = vector.broadcast %922 : f32 to vector<16x128xf32>
    %924 = arith.mulf %923, %913 : vector<16x128xf32>
    %925 = arith.addf %911, %924 : vector<16x128xf32>
    %c8_261 = arith.constant 8 : index
    %926 = memref.load %arg2[%c8_261] : memref<36xf32, #tpu.memory_space<smem>>
    %927 = vector.broadcast %926 : f32 to vector<16x128xf32>
    %928 = arith.mulf %927, %815 : vector<16x128xf32>
    %929 = arith.addf %917, %928 : vector<16x128xf32>
    %c20_262 = arith.constant 20 : index
    %930 = memref.load %arg2[%c20_262] : memref<36xf32, #tpu.memory_space<smem>>
    %931 = vector.broadcast %930 : f32 to vector<16x128xf32>
    %932 = arith.mulf %931, %815 : vector<16x128xf32>
    %933 = arith.addf %921, %932 : vector<16x128xf32>
    %c32_263 = arith.constant 32 : index
    %934 = memref.load %arg2[%c32_263] : memref<36xf32, #tpu.memory_space<smem>>
    %935 = vector.broadcast %934 : f32 to vector<16x128xf32>
    %936 = arith.mulf %935, %815 : vector<16x128xf32>
    %937 = arith.addf %925, %936 : vector<16x128xf32>
    %c127_i32_264 = arith.constant 127 : i32
    %938 = tpu.dynamic_rotate %815 by %c127_i32_264 dim 1 : vector<16x128xf32>, i32 -> vector<16x128xf32>
    %c9_265 = arith.constant 9 : index
    %939 = memref.load %arg2[%c9_265] : memref<36xf32, #tpu.memory_space<smem>>
    %940 = vector.broadcast %939 : f32 to vector<16x128xf32>
    %941 = arith.mulf %940, %938 : vector<16x128xf32>
    %942 = arith.addf %929, %941 : vector<16x128xf32>
    %c21_266 = arith.constant 21 : index
    %943 = memref.load %arg2[%c21_266] : memref<36xf32, #tpu.memory_space<smem>>
    %944 = vector.broadcast %943 : f32 to vector<16x128xf32>
    %945 = arith.mulf %944, %938 : vector<16x128xf32>
    %946 = arith.addf %933, %945 : vector<16x128xf32>
    %c33_267 = arith.constant 33 : index
    %947 = memref.load %arg2[%c33_267] : memref<36xf32, #tpu.memory_space<smem>>
    %948 = vector.broadcast %947 : f32 to vector<16x128xf32>
    %949 = arith.mulf %948, %938 : vector<16x128xf32>
    %950 = arith.addf %937, %949 : vector<16x128xf32>
    %c15_i32_268 = arith.constant 15 : i32
    %951 = tpu.dynamic_rotate %815 by %c15_i32_268 dim 0 : vector<16x128xf32>, i32 -> vector<16x128xf32>
    %c10_269 = arith.constant 10 : index
    %952 = memref.load %arg2[%c10_269] : memref<36xf32, #tpu.memory_space<smem>>
    %953 = vector.broadcast %952 : f32 to vector<16x128xf32>
    %954 = arith.mulf %953, %951 : vector<16x128xf32>
    %955 = arith.addf %942, %954 : vector<16x128xf32>
    %c22_270 = arith.constant 22 : index
    %956 = memref.load %arg2[%c22_270] : memref<36xf32, #tpu.memory_space<smem>>
    %957 = vector.broadcast %956 : f32 to vector<16x128xf32>
    %958 = arith.mulf %957, %951 : vector<16x128xf32>
    %959 = arith.addf %946, %958 : vector<16x128xf32>
    %c34_271 = arith.constant 34 : index
    %960 = memref.load %arg2[%c34_271] : memref<36xf32, #tpu.memory_space<smem>>
    %961 = vector.broadcast %960 : f32 to vector<16x128xf32>
    %962 = arith.mulf %961, %951 : vector<16x128xf32>
    %963 = arith.addf %950, %962 : vector<16x128xf32>
    %c15_i32_272 = arith.constant 15 : i32
    %964 = tpu.dynamic_rotate %815 by %c15_i32_272 dim 0 : vector<16x128xf32>, i32 -> vector<16x128xf32>
    %c127_i32_273 = arith.constant 127 : i32
    %965 = tpu.dynamic_rotate %964 by %c127_i32_273 dim 1 : vector<16x128xf32>, i32 -> vector<16x128xf32>
    %c11_274 = arith.constant 11 : index
    %966 = memref.load %arg2[%c11_274] : memref<36xf32, #tpu.memory_space<smem>>
    %967 = vector.broadcast %966 : f32 to vector<16x128xf32>
    %968 = arith.mulf %967, %965 : vector<16x128xf32>
    %969 = arith.addf %955, %968 : vector<16x128xf32>
    %c23_275 = arith.constant 23 : index
    %970 = memref.load %arg2[%c23_275] : memref<36xf32, #tpu.memory_space<smem>>
    %971 = vector.broadcast %970 : f32 to vector<16x128xf32>
    %972 = arith.mulf %971, %965 : vector<16x128xf32>
    %973 = arith.addf %959, %972 : vector<16x128xf32>
    %c35_276 = arith.constant 35 : index
    %974 = memref.load %arg2[%c35_276] : memref<36xf32, #tpu.memory_space<smem>>
    %975 = vector.broadcast %974 : f32 to vector<16x128xf32>
    %976 = arith.mulf %975, %965 : vector<16x128xf32>
    %977 = arith.addf %963, %976 : vector<16x128xf32>
    %c0_277 = arith.constant 0 : index
    %c0_278 = arith.constant 0 : index
    %c0_279 = arith.constant 0 : index
    %978 = vector.load %arg5[%c0_277, %c0_278, %c0_279] : memref<3x16x128xf32, #tpu.memory_space<vmem>>, vector<1x16x128xf32>
    %979 = vector.shape_cast %978 : vector<1x16x128xf32> to vector<16x128xf32>
    %980 = vector.shape_cast %969 : vector<16x128xf32> to vector<1x16x128xf32>
    tpu.vector_store %arg5[%c0_277, %c0_278, %c0_279], %980 {strides = array<i32>} : memref<3x16x128xf32, #tpu.memory_space<vmem>>, vector<1x16x128xf32>,
    %c1_280 = arith.constant 1 : index
    %c0_281 = arith.constant 0 : index
    %c0_282 = arith.constant 0 : index
    %981 = vector.load %arg5[%c1_280, %c0_281, %c0_282] : memref<3x16x128xf32, #tpu.memory_space<vmem>>, vector<1x16x128xf32>
    %982 = vector.shape_cast %981 : vector<1x16x128xf32> to vector<16x128xf32>
    %983 = vector.shape_cast %973 : vector<16x128xf32> to vector<1x16x128xf32>
    tpu.vector_store %arg5[%c1_280, %c0_281, %c0_282], %983 {strides = array<i32>} : memref<3x16x128xf32, #tpu.memory_space<vmem>>, vector<1x16x128xf32>,
    %c2_283 = arith.constant 2 : index
    %c0_284 = arith.constant 0 : index
    %c0_285 = arith.constant 0 : index
    %984 = vector.load %arg5[%c2_283, %c0_284, %c0_285] : memref<3x16x128xf32, #tpu.memory_space<vmem>>, vector<1x16x128xf32>
    %985 = vector.shape_cast %984 : vector<1x16x128xf32> to vector<16x128xf32>
    %986 = vector.shape_cast %977 : vector<16x128xf32> to vector<1x16x128xf32>
    tpu.vector_store %arg5[%c2_283, %c0_284, %c0_285], %986 {strides = array<i32>} : memref<3x16x128xf32, #tpu.memory_space<vmem>>, vector<1x16x128xf32>,
    return
  }
}

</mosaic_0001>

<llo_original>
// kernel: tpu_custom_call.1
$region0: #{tpu_custom_call.1}
  #allocation0 [shape = 'u32[]', space=smem, size = 0x4, offset = 0x4, fixed_abs, tag = 'smem constant byte address 0x4 - core index']
  #allocation1 [shape = 'u32[72,128]{1,0:T(1,128)}', space=vmem, size = 0x9000, scoped, tag = 'internal scratch']
  %s0 = inlined_call_operand.hbm [shape: f32[36], index: 0, kind: input, shape index: {}]
  %s1 = inlined_call_operand.hbm [shape: f32[3], index: 1, kind: input, shape index: {}]
  %s2 = inlined_call_operand.vmem [shape: f32[36], index: 2, kind: input, shape index: {}]
  %s3 = inlined_call_operand.vmem [shape: f32[3], index: 3, kind: input, shape index: {}]
  %s4 = inlined_call_operand.hbm [shape: f32[3,16,128], index: 4, kind: input, shape index: {}]
  %s5 = inlined_call_operand.hbm [shape: f32[3,16,128], index: 5, kind: output, shape index: {}]
  %s6 = sld [smem:[#allocation0]]
  $region50: #{tpu_custom_call.1} parent=0
    _
  %s8 = ssub.s32 1, %s6
  %s9 = scalar_select 0, %s8, %s6
  $region1: #{tpu_custom_call.1} parent=0
    #allocation2 [shape = 'u8[512]{0}', space=smem, size = 0x200, scoped, tag = 'input window, operand 0, single buffered']
    #allocation3 [shape = 's32[1]{0}', space=sflag, size = 0x4, scoped, tag = 'scoped memory for tpu_custom_call.1']
    #allocation4 [shape = 's32[1]{0}', space=sflag, size = 0x4, scoped, tag = 'scoped memory for tpu_custom_call.1']
    #allocation5 [shape = 's32[1]{0}', space=sflag, size = 0x4, scoped, tag = 'scoped memory for tpu_custom_call.1']
    #allocation6 [shape = 's32[1]{0}', space=sflag, size = 0x4, scoped, tag = 'scoped memory for tpu_custom_call.1']
    #allocation7 [shape = 'u8[512]{0}', space=smem, size = 0x200, scoped, tag = 'input window, operand 1, single buffered']
    #allocation8 [shape = 's32[1]{0}', space=sflag, size = 0x4, scoped, tag = 'scoped memory for tpu_custom_call.1']
    #allocation9 [shape = 'u8[512]{0}', space=smem, size = 0x200, scoped, tag = 'input window, operand 2, single buffered']
    #allocation10 [shape = 'u8[512]{0}', space=smem, size = 0x200, scoped, tag = 'input window, operand 3, single buffered']
    #allocation11 [shape = 's32[1]{0}', space=sflag, size = 0x4, scoped, tag = 'scoped memory for tpu_custom_call.1']
    #allocation12 [shape = 'u8[24576]{0}', space=vmem, size = 0x6000, scoped, tag = 'input window, operand 4, single buffered']
    #allocation13 [shape = 'u8[24576]{0}', space=vmem, size = 0x6000, scoped, tag = 'output window, operand 0, single buffered']
    %10 = vsyncpa [#allocation5], 0
    %11 = vsyncpa [#allocation8], 0
    %12 = vsyncpa [#allocation6], 0
    %13 = vsyncpa [#allocation11], 0
    %14 = vsyncpa [#allocation3], 0
    %15 = vsyncpa [#allocation4], 0
    // Predicated region
    $region2: #{tpu_custom_call.1} parent=1 // pred_check
      _
    $region3: #{tpu_custom_call.1} parent=1 // pred_check_branch
      %17 = sbr.rel (0) target = $region5
    $region4: #{tpu_custom_call.1} parent=1 // pred_region
      %19 = vsyncadd [#allocation5], 0
      %s21 = sshll.u32 %s0, 4
      %s22 = int_to_ptr.hbm [resolvable:$true] %s21
      %24 = dma.hbm_to_smem %s22, 16, [#allocation2], [#allocation5]
    $region5: #{tpu_custom_call.1} parent=1 // pred_fallthru
      _
    // Predicated region
    $region6: #{tpu_custom_call.1} parent=1 // pred_check
      _
    $region7: #{tpu_custom_call.1} parent=1 // pred_check_branch
      %26 = sbr.rel (0) target = $region9
    $region8: #{tpu_custom_call.1} parent=1 // pred_region
      %28 = vsyncadd [#allocation8], 0
      %s30 = sshll.u32 %s1, 4
      %s31 = int_to_ptr.hbm [resolvable:$true] %s30
      %33 = dma.hbm_to_smem %s31, 16, [#allocation7], [#allocation8]
    $region9: #{tpu_custom_call.1} parent=1 // pred_fallthru
      _
    // Predicated region
    $region10: #{tpu_custom_call.1} parent=1 // pred_check
      _
    $region11: #{tpu_custom_call.1} parent=1 // pred_check_branch
      %35 = sbr.rel (0) target = $region13
    $region12: #{tpu_custom_call.1} parent=1 // pred_region
      %37 = vsyncadd [#allocation6], 0
      %s39 = sshll.u32 %s2, 4
      %s40 = int_to_ptr.vmem [resolvable:$true] %s39
      %42 = dma.vmem_to_smem %s40, 16, [#allocation9], [#allocation6]
    $region13: #{tpu_custom_call.1} parent=1 // pred_fallthru
      _
    // Predicated region
    $region14: #{tpu_custom_call.1} parent=1 // pred_check
      _
    $region15: #{tpu_custom_call.1} parent=1 // pred_check_branch
      %44 = sbr.rel (0) target = $region17
    $region16: #{tpu_custom_call.1} parent=1 // pred_region
      %46 = vsyncadd [#allocation11], 0
      %s48 = sshll.u32 %s3, 4
      %s49 = int_to_ptr.vmem [resolvable:$true] %s48
      %51 = dma.vmem_to_smem %s49, 16, [#allocation10], [#allocation11]
    $region17: #{tpu_custom_call.1} parent=1 // pred_fallthru
      _
    // Predicated region
    $region18: #{tpu_custom_call.1} parent=1 // pred_check
      _
    $region19: #{tpu_custom_call.1} parent=1 // pred_check_branch
      %53 = sbr.rel (0) target = $region21
    $region20: #{tpu_custom_call.1} parent=1 // pred_region
      %55 = vsyncadd [#allocation3], 0
      %s56 = sshll.u32 %s4, 4
      %s57 = int_to_ptr.hbm [resolvable:$true] %s56
      %s58 = sshll.u32 [#allocation12], 4
      %s59 = int_to_ptr.vmem [resolvable:$true] %s58
      %64 = dma.hbm_to_vmem [thread:$0]  %s57, 768, %s59, [#allocation3], 128, 128, 8
    $region21: #{tpu_custom_call.1} parent=1 // pred_fallthru
      _
    // Predicated region
    $region22: #{tpu_custom_call.1} parent=1 // pred_check
      _
    $region23: #{tpu_custom_call.1} parent=1 // pred_check_branch
      %66 = sbr.rel (0) target = $region25
    $region24: #{tpu_custom_call.1} parent=1 // pred_region
      %68 = dma.done [#allocation5], 16
    $region25: #{tpu_custom_call.1} parent=1 // pred_fallthru
      _
    // Predicated region
    $region26: #{tpu_custom_call.1} parent=1 // pred_check
      _
    $region27: #{tpu_custom_call.1} parent=1 // pred_check_branch
      %70 = sbr.rel (0) target = $region29
    $region28: #{tpu_custom_call.1} parent=1 // pred_region
      %72 = dma.done [#allocation8], 16
    $region29: #{tpu_custom_call.1} parent=1 // pred_fallthru
      _
    // Predicated region
    $region30: #{tpu_custom_call.1} parent=1 // pred_check
      _
    $region31: #{tpu_custom_call.1} parent=1 // pred_check_branch
      %74 = sbr.rel (0) target = $region33
    $region32: #{tpu_custom_call.1} parent=1 // pred_region
      %76 = dma.done [#allocation6], 16
    $region33: #{tpu_custom_call.1} parent=1 // pred_fallthru
      _
    // Predicated region
    $region34: #{tpu_custom_call.1} parent=1 // pred_check
      _
    $region35: #{tpu_custom_call.1} parent=1 // pred_check_branch
      %78 = sbr.rel (0) target = $region37
    $region36: #{tpu_custom_call.1} parent=1 // pred_region
      %80 = dma.done [#allocation11], 16
    $region37: #{tpu_custom_call.1} parent=1 // pred_fallthru
      _
    // Predicated region
    $region38: #{tpu_custom_call.1} parent=1 // pred_check
      _
    $region39: #{tpu_custom_call.1} parent=1 // pred_check_branch
      %82 = sbr.rel (0) target = $region41
    $region40: #{tpu_custom_call.1} parent=1 // pred_region
      %84 = dma.done [#allocation3], 768
    $region41: #{tpu_custom_call.1} parent=1 // pred_fallthru
      _
    %85 = sfence
    %v86 = vld [vmem:[#allocation12] sm:$0xff]
    %v87 = vld [vmem:[#allocation12 + $0x8] sm:$0xff]
    %s88 = scalar_lea.vmem [#allocation12], 16
    %v89 = vld [vmem:[%s88] sm:$0xff]
    %v90 = vld [vmem:[%s88 + $0x8] sm:$0xff]
    %s91 = scalar_lea.vmem [#allocation12], 32
    %v92 = vld [vmem:[%s91] sm:$0xff]
    %v93 = vld [vmem:[%s91 + $0x8] sm:$0xff]
    %s94 = sld [smem:[#allocation7]]
    %v95 = vstv %s94
    %s96 = sld [smem:[#allocation7 + $0x1]]
    %v97 = vstv %s96
    %s98 = sld [smem:[#allocation7 + $0x2]]
    %v99 = vstv %s98
    %s100 = sld [smem:[#allocation2]]
    %v101 = vstv %s100
    %v102 = vmul.f32 %v101, %v86
    %v103 = vmul.f32 %v101, %v87
    %v104 = vadd.f32 %v95, %v102
    %v105 = vadd.f32 %v95, %v103
    %s106 = sld [smem:[#allocation2 + $0xc]]
    %v107 = vstv %s106
    %v108 = vmul.f32 %v107, %v86
    %v109 = vmul.f32 %v107, %v87
    %v110 = vadd.f32 %v97, %v108
    %v111 = vadd.f32 %v97, %v109
    %s112 = sld [smem:[#allocation2 + $0x18]]
    %v113 = vstv %s112
    %v114 = vmul.f32 %v113, %v86
    %v115 = vmul.f32 %v113, %v87
    %v116 = vadd.f32 %v99, %v114
    %v117 = vadd.f32 %v99, %v115
    %118 = vrot.lane.b32.xlu0 %v86, 127
    %v119 = vpop.permute.xlu0 %118
    %120 = vrot.lane.b32.xlu0 %v87, 127
    %v121 = vpop.permute.xlu0 %120
    %s122 = sld [smem:[#allocation2 + $0x1]]
    %v123 = vstv %s122
    %v124 = vmul.f32 %v123, %v119
    %v125 = vmul.f32 %v123, %v121
    %v126 = vadd.f32 %v104, %v124
    %v127 = vadd.f32 %v105, %v125
    %s128 = sld [smem:[#allocation2 + $0xd]]
    %v129 = vstv %s128
    %v130 = vmul.f32 %v129, %v119
    %v131 = vmul.f32 %v129, %v121
    %v132 = vadd.f32 %v110, %v130
    %v133 = vadd.f32 %v111, %v131
    %s134 = sld [smem:[#allocation2 + $0x19]]
    %v135 = vstv %s134
    %v136 = vmul.f32 %v135, %v119
    %v137 = vmul.f32 %v135, %v121
    %v138 = vadd.f32 %v116, %v136
    %v139 = vadd.f32 %v117, %v137
    %v140 = vrot.slane %v86, 1
    %v141 = vrot.slane %v87, 1
    %v142 = vlaneseq
    %v143 = vshrl.u32 %v142, 7
    %vm144 = vcmp.lt.s32.totalorder %v143, 7
    %v145 = vsel %vm144, %v140, %v141
    %v146 = vsel %vm144, %v141, %v140
    %s147 = sld [smem:[#allocation2 + $0x2]]
    %v148 = vstv %s147
    %v149 = vmul.f32 %v148, %v145
    %v150 = vmul.f32 %v148, %v146
    %v151 = vadd.f32 %v126, %v149
    %v152 = vadd.f32 %v127, %v150
    %s153 = sld [smem:[#allocation2 + $0xe]]
    %v154 = vstv %s153
    %v155 = vmul.f32 %v154, %v145
    %v156 = vmul.f32 %v154, %v146
    %v157 = vadd.f32 %v132, %v155
    %v158 = vadd.f32 %v133, %v156
    %s159 = sld [smem:[#allocation2 + $0x1a]]
    %v160 = vstv %s159
    %v161 = vmul.f32 %v160, %v145
    %v162 = vmul.f32 %v160, %v146
    %v163 = vadd.f32 %v138, %v161
    %v164 = vadd.f32 %v139, %v162
    %165 = vrot.lane.b32.xlu0 %v145, 127
    %v166 = vpop.permute.xlu0 %165
    %167 = vrot.lane.b32.xlu0 %v146, 127
    %v168 = vpop.permute.xlu0 %167
    %s169 = sld [smem:[#allocation2 + $0x3]]
    %v170 = vstv %s169
    %v171 = vmul.f32 %v170, %v166
    %v172 = vmul.f32 %v170, %v168
    %v173 = vadd.f32 %v151, %v171
    %v174 = vadd.f32 %v152, %v172
    %s175 = sld [smem:[#allocation2 + $0xf]]
    %v176 = vstv %s175
    %v177 = vmul.f32 %v176, %v166
    %v178 = vmul.f32 %v176, %v168
    %v179 = vadd.f32 %v157, %v177
    %v180 = vadd.f32 %v158, %v178
    %s181 = sld [smem:[#allocation2 + $0x1b]]
    %v182 = vstv %s181
    %v183 = vmul.f32 %v182, %v166
    %v184 = vmul.f32 %v182, %v168
    %v185 = vadd.f32 %v163, %v183
    %v186 = vadd.f32 %v164, %v184
    %s187 = sld [smem:[#allocation2 + $0x4]]
    %v188 = vstv %s187
    %v189 = vmul.f32 %v188, %v89
    %v190 = vmul.f32 %v188, %v90
    %v191 = vadd.f32 %v173, %v189
    %v192 = vadd.f32 %v174, %v190
    %s193 = sld [smem:[#allocation2 + $0x10]]
    %v194 = vstv %s193
    %v195 = vmul.f32 %v194, %v89
    %v196 = vmul.f32 %v194, %v90
    %v197 = vadd.f32 %v179, %v195
    %v198 = vadd.f32 %v180, %v196
    %s199 = sld [smem:[#allocation2 + $0x1c]]
    %v200 = vstv %s199
    %v201 = vmul.f32 %v200, %v89
    %v202 = vmul.f32 %v200, %v90
    %v203 = vadd.f32 %v185, %v201
    %v204 = vadd.f32 %v186, %v202
    %205 = vrot.lane.b32.xlu0 %v89, 127
    %v206 = vpop.permute.xlu0 %205
    %207 = vrot.lane.b32.xlu0 %v90, 127
    %v208 = vpop.permute.xlu0 %207
    %s209 = sld [smem:[#allocation2 + $0x5]]
    %v210 = vstv %s209
    %v211 = vmul.f32 %v210, %v206
    %v212 = vmul.f32 %v210, %v208
    %v213 = vadd.f32 %v191, %v211
    %v214 = vadd.f32 %v192, %v212
    %s215 = sld [smem:[#allocation2 + $0x11]]
    %v216 = vstv %s215
    %v217 = vmul.f32 %v216, %v206
    %v218 = vmul.f32 %v216, %v208
    %v219 = vadd.f32 %v197, %v217
    %v220 = vadd.f32 %v198, %v218
    %s221 = sld [smem:[#allocation2 + $0x1d]]
    %v222 = vstv %s221
    %v223 = vmul.f32 %v222, %v206
    %v224 = vmul.f32 %v222, %v208
    %v225 = vadd.f32 %v203, %v223
    %v226 = vadd.f32 %v204, %v224
    %v227 = vrot.slane %v89, 1
    %v228 = vrot.slane %v90, 1
    %v229 = vsel %vm144, %v227, %v228
    %v230 = vsel %vm144, %v228, %v227
    %s231 = sld [smem:[#allocation2 + $0x6]]
    %v232 = vstv %s231
    %v233 = vmul.f32 %v232, %v229
    %v234 = vmul.f32 %v232, %v230
    %v235 = vadd.f32 %v213, %v233
    %v236 = vadd.f32 %v214, %v234
    %s237 = sld [smem:[#allocation2 + $0x12]]
    %v238 = vstv %s237
    %v239 = vmul.f32 %v238, %v229
    %v240 = vmul.f32 %v238, %v230
    %v241 = vadd.f32 %v219, %v239
    %v242 = vadd.f32 %v220, %v240
    %s243 = sld [smem:[#allocation2 + $0x1e]]
    %v244 = vstv %s243
    %v245 = vmul.f32 %v244, %v229
    %v246 = vmul.f32 %v244, %v230
    %v247 = vadd.f32 %v225, %v245
    %v248 = vadd.f32 %v226, %v246
    %249 = vrot.lane.b32.xlu0 %v229, 127
    %v250 = vpop.permute.xlu0 %249
    %251 = vrot.lane.b32.xlu0 %v230, 127
    %v252 = vpop.permute.xlu0 %251
    %s253 = sld [smem:[#allocation2 + $0x7]]
    %v254 = vstv %s253
    %v255 = vmul.f32 %v254, %v250
    %v256 = vmul.f32 %v254, %v252
    %v257 = vadd.f32 %v235, %v255
    %v258 = vadd.f32 %v236, %v256
    %s259 = sld [smem:[#allocation2 + $0x13]]
    %v260 = vstv %s259
    %v261 = vmul.f32 %v260, %v250
    %v262 = vmul.f32 %v260, %v252
    %v263 = vadd.f32 %v241, %v261
    %v264 = vadd.f32 %v242, %v262
    %s265 = sld [smem:[#allocation2 + $0x1f]]
    %v266 = vstv %s265
    %v267 = vmul.f32 %v266, %v250
    %v268 = vmul.f32 %v266, %v252
    %v269 = vadd.f32 %v247, %v267
    %v270 = vadd.f32 %v248, %v268
    %s271 = sld [smem:[#allocation2 + $0x8]]
    %v272 = vstv %s271
    %v273 = vmul.f32 %v272, %v92
    %v274 = vmul.f32 %v272, %v93
    %v275 = vadd.f32 %v257, %v273
    %v276 = vadd.f32 %v258, %v274
    %s277 = sld [smem:[#allocation2 + $0x14]]
    %v278 = vstv %s277
    %v279 = vmul.f32 %v278, %v92
    %v280 = vmul.f32 %v278, %v93
    %v281 = vadd.f32 %v263, %v279
    %v282 = vadd.f32 %v264, %v280
    %s283 = sld [smem:[#allocation2 + $0x20]]
    %v284 = vstv %s283
    %v285 = vmul.f32 %v284, %v92
    %v286 = vmul.f32 %v284, %v93
    %v287 = vadd.f32 %v269, %v285
    %v288 = vadd.f32 %v270, %v286
    %289 = vrot.lane.b32.xlu0 %v92, 127
    %v290 = vpop.permute.xlu0 %289
    %291 = vrot.lane.b32.xlu0 %v93, 127
    %v292 = vpop.permute.xlu0 %291
    %s293 = sld [smem:[#allocation2 + $0x9]]
    %v294 = vstv %s293
    %v295 = vmul.f32 %v294, %v290
    %v296 = vmul.f32 %v294, %v292
    %v297 = vadd.f32 %v275, %v295
    %v298 = vadd.f32 %v276, %v296
    %s299 = sld [smem:[#allocation2 + $0x15]]
    %v300 = vstv %s299
    %v301 = vmul.f32 %v300, %v290
    %v302 = vmul.f32 %v300, %v292
    %v303 = vadd.f32 %v281, %v301
    %v304 = vadd.f32 %v282, %v302
    %s305 = sld [smem:[#allocation2 + $0x21]]
    %v306 = vstv %s305
    %v307 = vmul.f32 %v306, %v290
    %v308 = vmul.f32 %v306, %v292
    %v309 = vadd.f32 %v287, %v307
    %v310 = vadd.f32 %v288, %v308
    %v311 = vrot.slane %v92, 1
    %v312 = vrot.slane %v93, 1
    %v313 = vsel %vm144, %v311, %v312
    %v314 = vsel %vm144, %v312, %v311
    %s315 = sld [smem:[#allocation2 + $0xa]]
    %v316 = vstv %s315
    %v317 = vmul.f32 %v316, %v313
    %v318 = vmul.f32 %v316, %v314
    %v319 = vadd.f32 %v297, %v317
    %v320 = vadd.f32 %v298, %v318
    %s321 = sld [smem:[#allocation2 + $0x16]]
    %v322 = vstv %s321
    %v323 = vmul.f32 %v322, %v313
    %v324 = vmul.f32 %v322, %v314
    %v325 = vadd.f32 %v303, %v323
    %v326 = vadd.f32 %v304, %v324
    %s327 = sld [smem:[#allocation2 + $0x22]]
    %v328 = vstv %s327
    %v329 = vmul.f32 %v328, %v313
    %v330 = vmul.f32 %v328, %v314
    %v331 = vadd.f32 %v309, %v329
    %v332 = vadd.f32 %v310, %v330
    %333 = vrot.lane.b32.xlu0 %v313, 127
    %v334 = vpop.permute.xlu0 %333
    %335 = vrot.lane.b32.xlu0 %v314, 127
    %v336 = vpop.permute.xlu0 %335
    %s337 = sld [smem:[#allocation2 + $0xb]]
    %v338 = vstv %s337
    %v339 = vmul.f32 %v338, %v334
    %v340 = vmul.f32 %v338, %v336
    %v341 = vadd.f32 %v319, %v339
    %v342 = vadd.f32 %v320, %v340
    %s343 = sld [smem:[#allocation2 + $0x17]]
    %v344 = vstv %s343
    %v345 = vmul.f32 %v344, %v334
    %v346 = vmul.f32 %v344, %v336
    %v347 = vadd.f32 %v325, %v345
    %v348 = vadd.f32 %v326, %v346
    %s349 = sld [smem:[#allocation2 + $0x23]]
    %v350 = vstv %s349
    %v351 = vmul.f32 %v350, %v334
    %v352 = vmul.f32 %v350, %v336
    %v353 = vadd.f32 %v331, %v351
    %v354 = vadd.f32 %v332, %v352
    %v355 = vmul.f32 %v101, %v341
    %v356 = vmul.f32 %v101, %v342
    %v357 = vadd.f32 %v95, %v355
    %v358 = vadd.f32 %v95, %v356
    %v359 = vmul.f32 %v107, %v341
    %v360 = vmul.f32 %v107, %v342
    %v361 = vadd.f32 %v97, %v359
    %v362 = vadd.f32 %v97, %v360
    %v363 = vmul.f32 %v113, %v341
    %v364 = vmul.f32 %v113, %v342
    %v365 = vadd.f32 %v99, %v363
    %v366 = vadd.f32 %v99, %v364
    %367 = vrot.lane.b32.xlu0 %v341, 127
    %v368 = vpop.permute.xlu0 %367
    %369 = vrot.lane.b32.xlu0 %v342, 127
    %v370 = vpop.permute.xlu0 %369
    %v371 = vmul.f32 %v123, %v368
    %v372 = vmul.f32 %v123, %v370
    %v373 = vadd.f32 %v357, %v371
    %v374 = vadd.f32 %v358, %v372
    %v375 = vmul.f32 %v129, %v368
    %v376 = vmul.f32 %v129, %v370
    %v377 = vadd.f32 %v361, %v375
    %v378 = vadd.f32 %v362, %v376
    %v379 = vmul.f32 %v135, %v368
    %v380 = vmul.f32 %v135, %v370
    %v381 = vadd.f32 %v365, %v379
    %v382 = vadd.f32 %v366, %v380
    %v383 = vrot.slane %v341, 1
    %v384 = vrot.slane %v342, 1
    %v385 = vsel %vm144, %v383, %v384
    %v386 = vsel %vm144, %v384, %v383
    %v387 = vmul.f32 %v148, %v385
    %v388 = vmul.f32 %v148, %v386
    %v389 = vadd.f32 %v373, %v387
    %v390 = vadd.f32 %v374, %v388
    %v391 = vmul.f32 %v154, %v385
    %v392 = vmul.f32 %v154, %v386
    %v393 = vadd.f32 %v377, %v391
    %v394 = vadd.f32 %v378, %v392
    %v395 = vmul.f32 %v160, %v385
    %v396 = vmul.f32 %v160, %v386
    %v397 = vadd.f32 %v381, %v395
    %v398 = vadd.f32 %v382, %v396
    %399 = vrot.lane.b32.xlu0 %v385, 127
    %v400 = vpop.permute.xlu0 %399
    %401 = vrot.lane.b32.xlu0 %v386, 127
    %v402 = vpop.permute.xlu0 %401
    %v403 = vmul.f32 %v170, %v400
    %v404 = vmul.f32 %v170, %v402
    %v405 = vadd.f32 %v389, %v403
    %v406 = vadd.f32 %v390, %v404
    %v407 = vmul.f32 %v176, %v400
    %v408 = vmul.f32 %v176, %v402
    %v409 = vadd.f32 %v393, %v407
    %v410 = vadd.f32 %v394, %v408
    %v411 = vmul.f32 %v182, %v400
    %v412 = vmul.f32 %v182, %v402
    %v413 = vadd.f32 %v397, %v411
    %v414 = vadd.f32 %v398, %v412
    %v415 = vmul.f32 %v188, %v347
    %v416 = vmul.f32 %v188, %v348
    %v417 = vadd.f32 %v405, %v415
    %v418 = vadd.f32 %v406, %v416
    %v419 = vmul.f32 %v194, %v347
    %v420 = vmul.f32 %v194, %v348
    %v421 = vadd.f32 %v409, %v419
    %v422 = vadd.f32 %v410, %v420
    %v423 = vmul.f32 %v200, %v347
    %v424 = vmul.f32 %v200, %v348
    %v425 = vadd.f32 %v413, %v423
    %v426 = vadd.f32 %v414, %v424
    %427 = vrot.lane.b32.xlu0 %v347, 127
    %v428 = vpop.permute.xlu0 %427
    %429 = vrot.lane.b32.xlu0 %v348, 127
    %v430 = vpop.permute.xlu0 %429
    %v431 = vmul.f32 %v210, %v428
    %v432 = vmul.f32 %v210, %v430
    %v433 = vadd.f32 %v417, %v431
    %v434 = vadd.f32 %v418, %v432
    %v435 = vmul.f32 %v216, %v428
    %v436 = vmul.f32 %v216, %v430
    %v437 = vadd.f32 %v421, %v435
    %v438 = vadd.f32 %v422, %v436
    %v439 = vmul.f32 %v222, %v428
    %v440 = vmul.f32 %v222, %v430
    %v441 = vadd.f32 %v425, %v439
    %v442 = vadd.f32 %v426, %v440
    %v443 = vrot.slane %v347, 1
    %v444 = vrot.slane %v348, 1
    %v445 = vsel %vm144, %v443, %v444
    %v446 = vsel %vm144, %v444, %v443
    %v447 = vmul.f32 %v232, %v445
    %v448 = vmul.f32 %v232, %v446
    %v449 = vadd.f32 %v433, %v447
    %v450 = vadd.f32 %v434, %v448
    %v451 = vmul.f32 %v238, %v445
    %v452 = vmul.f32 %v238, %v446
    %v453 = vadd.f32 %v437, %v451
    %v454 = vadd.f32 %v438, %v452
    %v455 = vmul.f32 %v244, %v445
    %v456 = vmul.f32 %v244, %v446
    %v457 = vadd.f32 %v441, %v455
    %v458 = vadd.f32 %v442, %v456
    %459 = vrot.lane.b32.xlu0 %v445, 127
    %v460 = vpop.permute.xlu0 %459
    %461 = vrot.lane.b32.xlu0 %v446, 127
    %v462 = vpop.permute.xlu0 %461
    %v463 = vmul.f32 %v254, %v460
    %v464 = vmul.f32 %v254, %v462
    %v465 = vadd.f32 %v449, %v463
    %v466 = vadd.f32 %v450, %v464
    %v467 = vmul.f32 %v260, %v460
    %v468 = vmul.f32 %v260, %v462
    %v469 = vadd.f32 %v453, %v467
    %v470 = vadd.f32 %v454, %v468
    %v471 = vmul.f32 %v266, %v460
    %v472 = vmul.f32 %v266, %v462
    %v473 = vadd.f32 %v457, %v471
    %v474 = vadd.f32 %v458, %v472
    %v475 = vmul.f32 %v272, %v353
    %v476 = vmul.f32 %v272, %v354
    %v477 = vadd.f32 %v465, %v475
    %v478 = vadd.f32 %v466, %v476
    %v479 = vmul.f32 %v278, %v353
    %v480 = vmul.f32 %v278, %v354
    %v481 = vadd.f32 %v469, %v479
    %v482 = vadd.f32 %v470, %v480
    %v483 = vmul.f32 %v284, %v353
    %v484 = vmul.f32 %v284, %v354
    %v485 = vadd.f32 %v473, %v483
    %v486 = vadd.f32 %v474, %v484
    %487 = vrot.lane.b32.xlu0 %v353, 127
    %v488 = vpop.permute.xlu0 %487
    %489 = vrot.lane.b32.xlu0 %v354, 127
    %v490 = vpop.permute.xlu0 %489
    %v491 = vmul.f32 %v294, %v488
    %v492 = vmul.f32 %v294, %v490
    %v493 = vadd.f32 %v477, %v491
    %v494 = vadd.f32 %v478, %v492
    %v495 = vmul.f32 %v300, %v488
    %v496 = vmul.f32 %v300, %v490
    %v497 = vadd.f32 %v481, %v495
    %v498 = vadd.f32 %v482, %v496
    %v499 = vmul.f32 %v306, %v488
    %v500 = vmul.f32 %v306, %v490
    %v501 = vadd.f32 %v485, %v499
    %v502 = vadd.f32 %v486, %v500
    %v503 = vrot.slane %v353, 1
    %v504 = vrot.slane %v354, 1
    %v505 = vsel %vm144, %v503, %v504
    %v506 = vsel %vm144, %v504, %v503
    %v507 = vmul.f32 %v316, %v505
    %v508 = vmul.f32 %v316, %v506
    %v509 = vadd.f32 %v493, %v507
    %v510 = vadd.f32 %v494, %v508
    %v511 = vmul.f32 %v322, %v505
    %v512 = vmul.f32 %v322, %v506
    %v513 = vadd.f32 %v497, %v511
    %v514 = vadd.f32 %v498, %v512
    %v515 = vmul.f32 %v328, %v505
    %v516 = vmul.f32 %v328, %v506
    %v517 = vadd.f32 %v501, %v515
    %v518 = vadd.f32 %v502, %v516
    %519 = vrot.lane.b32.xlu0 %v505, 127
    %v520 = vpop.permute.xlu0 %519
    %521 = vrot.lane.b32.xlu0 %v506, 127
    %v522 = vpop.permute.xlu0 %521
    %v523 = vmul.f32 %v338, %v520
    %v524 = vmul.f32 %v338, %v522
    %v525 = vadd.f32 %v509, %v523
    %v526 = vadd.f32 %v510, %v524
    %v527 = vmul.f32 %v344, %v520
    %v528 = vmul.f32 %v344, %v522
    %v529 = vadd.f32 %v513, %v527
    %v530 = vadd.f32 %v514, %v528
    %v531 = vmul.f32 %v350, %v520
    %v532 = vmul.f32 %v350, %v522
    %v533 = vadd.f32 %v517, %v531
    %v534 = vadd.f32 %v518, %v532
    %s535 = sld [smem:[#allocation10]]
    %v536 = vstv %s535
    %s537 = sld [smem:[#allocation10 + $0x1]]
    %v538 = vstv %s537
    %s539 = sld [smem:[#allocation10 + $0x2]]
    %v540 = vstv %s539
    %s541 = sld [smem:[#allocation9]]
    %v542 = vstv %s541
    %v543 = vmul.f32 %v542, %v525
    %v544 = vmul.f32 %v542, %v526
    %v545 = vadd.f32 %v536, %v543
    %v546 = vadd.f32 %v536, %v544
    %s547 = sld [smem:[#allocation9 + $0xc]]
    %v548 = vstv %s547
    %v549 = vmul.f32 %v548, %v525
    %v550 = vmul.f32 %v548, %v526
    %v551 = vadd.f32 %v538, %v549
    %v552 = vadd.f32 %v538, %v550
    %s553 = sld [smem:[#allocation9 + $0x18]]
    %v554 = vstv %s553
    %v555 = vmul.f32 %v554, %v525
    %v556 = vmul.f32 %v554, %v526
    %v557 = vadd.f32 %v540, %v555
    %v558 = vadd.f32 %v540, %v556
    %559 = vrot.lane.b32.xlu0 %v525, 127
    %v560 = vpop.permute.xlu0 %559
    %561 = vrot.lane.b32.xlu0 %v526, 127
    %v562 = vpop.permute.xlu0 %561
    %s563 = sld [smem:[#allocation9 + $0x1]]
    %v564 = vstv %s563
    %v565 = vmul.f32 %v564, %v560
    %v566 = vmul.f32 %v564, %v562
    %v567 = vadd.f32 %v545, %v565
    %v568 = vadd.f32 %v546, %v566
    %s569 = sld [smem:[#allocation9 + $0xd]]
    %v570 = vstv %s569
    %v571 = vmul.f32 %v570, %v560
    %v572 = vmul.f32 %v570, %v562
    %v573 = vadd.f32 %v551, %v571
    %v574 = vadd.f32 %v552, %v572
    %s575 = sld [smem:[#allocation9 + $0x19]]
    %v576 = vstv %s575
    %v577 = vmul.f32 %v576, %v560
    %v578 = vmul.f32 %v576, %v562
    %v579 = vadd.f32 %v557, %v577
    %v580 = vadd.f32 %v558, %v578
    %v581 = vrot.slane %v525, 1
    %v582 = vrot.slane %v526, 1
    %v583 = vsel %vm144, %v581, %v582
    %v584 = vsel %vm144, %v582, %v581
    %s585 = sld [smem:[#allocation9 + $0x2]]
    %v586 = vstv %s585
    %v587 = vmul.f32 %v586, %v583
    %v588 = vmul.f32 %v586, %v584
    %v589 = vadd.f32 %v567, %v587
    %v590 = vadd.f32 %v568, %v588
    %s591 = sld [smem:[#allocation9 + $0xe]]
    %v592 = vstv %s591
    %v593 = vmul.f32 %v592, %v583
    %v594 = vmul.f32 %v592, %v584
    %v595 = vadd.f32 %v573, %v593
    %v596 = vadd.f32 %v574, %v594
    %s597 = sld [smem:[#allocation9 + $0x1a]]
    %v598 = vstv %s597
    %v599 = vmul.f32 %v598, %v583
    %v600 = vmul.f32 %v598, %v584
    %v601 = vadd.f32 %v579, %v599
    %v602 = vadd.f32 %v580, %v600
    %603 = vrot.lane.b32.xlu0 %v583, 127
    %v604 = vpop.permute.xlu0 %603
    %605 = vrot.lane.b32.xlu0 %v584, 127
    %v606 = vpop.permute.xlu0 %605
    %s607 = sld [smem:[#allocation9 + $0x3]]
    %v608 = vstv %s607
    %v609 = vmul.f32 %v608, %v604
    %v610 = vmul.f32 %v608, %v606
    %v611 = vadd.f32 %v589, %v609
    %v612 = vadd.f32 %v590, %v610
    %s613 = sld [smem:[#allocation9 + $0xf]]
    %v614 = vstv %s613
    %v615 = vmul.f32 %v614, %v604
    %v616 = vmul.f32 %v614, %v606
    %v617 = vadd.f32 %v595, %v615
    %v618 = vadd.f32 %v596, %v616
    %s619 = sld [smem:[#allocation9 + $0x1b]]
    %v620 = vstv %s619
    %v621 = vmul.f32 %v620, %v604
    %v622 = vmul.f32 %v620, %v606
    %v623 = vadd.f32 %v601, %v621
    %v624 = vadd.f32 %v602, %v622
    %s625 = sld [smem:[#allocation9 + $0x4]]
    %v626 = vstv %s625
    %v627 = vmul.f32 %v626, %v529
    %v628 = vmul.f32 %v626, %v530
    %v629 = vadd.f32 %v611, %v627
    %v630 = vadd.f32 %v612, %v628
    %s631 = sld [smem:[#allocation9 + $0x10]]
    %v632 = vstv %s631
    %v633 = vmul.f32 %v632, %v529
    %v634 = vmul.f32 %v632, %v530
    %v635 = vadd.f32 %v617, %v633
    %v636 = vadd.f32 %v618, %v634
    %s637 = sld [smem:[#allocation9 + $0x1c]]
    %v638 = vstv %s637
    %v639 = vmul.f32 %v638, %v529
    %v640 = vmul.f32 %v638, %v530
    %v641 = vadd.f32 %v623, %v639
    %v642 = vadd.f32 %v624, %v640
    %643 = vrot.lane.b32.xlu0 %v529, 127
    %v644 = vpop.permute.xlu0 %643
    %645 = vrot.lane.b32.xlu0 %v530, 127
    %v646 = vpop.permute.xlu0 %645
    %s647 = sld [smem:[#allocation9 + $0x5]]
    %v648 = vstv %s647
    %v649 = vmul.f32 %v648, %v644
    %v650 = vmul.f32 %v648, %v646
    %v651 = vadd.f32 %v629, %v649
    %v652 = vadd.f32 %v630, %v650
    %s653 = sld [smem:[#allocation9 + $0x11]]
    %v654 = vstv %s653
    %v655 = vmul.f32 %v654, %v644
    %v656 = vmul.f32 %v654, %v646
    %v657 = vadd.f32 %v635, %v655
    %v658 = vadd.f32 %v636, %v656
    %s659 = sld [smem:[#allocation9 + $0x1d]]
    %v660 = vstv %s659
    %v661 = vmul.f32 %v660, %v644
    %v662 = vmul.f32 %v660, %v646
    %v663 = vadd.f32 %v641, %v661
    %v664 = vadd.f32 %v642, %v662
    %v665 = vrot.slane %v529, 1
    %v666 = vrot.slane %v530, 1
    %v667 = vsel %vm144, %v665, %v666
    %v668 = vsel %vm144, %v666, %v665
    %s669 = sld [smem:[#allocation9 + $0x6]]
    %v670 = vstv %s669
    %v671 = vmul.f32 %v670, %v667
    %v672 = vmul.f32 %v670, %v668
    %v673 = vadd.f32 %v651, %v671
    %v674 = vadd.f32 %v652, %v672
    %s675 = sld [smem:[#allocation9 + $0x12]]
    %v676 = vstv %s675
    %v677 = vmul.f32 %v676, %v667
    %v678 = vmul.f32 %v676, %v668
    %v679 = vadd.f32 %v657, %v677
    %v680 = vadd.f32 %v658, %v678
    %s681 = sld [smem:[#allocation9 + $0x1e]]
    %v682 = vstv %s681
    %v683 = vmul.f32 %v682, %v667
    %v684 = vmul.f32 %v682, %v668
    %v685 = vadd.f32 %v663, %v683
    %v686 = vadd.f32 %v664, %v684
    %687 = vrot.lane.b32.xlu0 %v667, 127
    %v688 = vpop.permute.xlu0 %687
    %689 = vrot.lane.b32.xlu0 %v668, 127
    %v690 = vpop.permute.xlu0 %689
    %s691 = sld [smem:[#allocation9 + $0x7]]
    %v692 = vstv %s691
    %v693 = vmul.f32 %v692, %v688
    %v694 = vmul.f32 %v692, %v690
    %v695 = vadd.f32 %v673, %v693
    %v696 = vadd.f32 %v674, %v694
    %s697 = sld [smem:[#allocation9 + $0x13]]
    %v698 = vstv %s697
    %v699 = vmul.f32 %v698, %v688
    %v700 = vmul.f32 %v698, %v690
    %v701 = vadd.f32 %v679, %v699
    %v702 = vadd.f32 %v680, %v700
    %s703 = sld [smem:[#allocation9 + $0x1f]]
    %v704 = vstv %s703
    %v705 = vmul.f32 %v704, %v688
    %v706 = vmul.f32 %v704, %v690
    %v707 = vadd.f32 %v685, %v705
    %v708 = vadd.f32 %v686, %v706
    %s709 = sld [smem:[#allocation9 + $0x8]]
    %v710 = vstv %s709
    %v711 = vmul.f32 %v710, %v533
    %v712 = vmul.f32 %v710, %v534
    %v713 = vadd.f32 %v695, %v711
    %v714 = vadd.f32 %v696, %v712
    %s715 = sld [smem:[#allocation9 + $0x14]]
    %v716 = vstv %s715
    %v717 = vmul.f32 %v716, %v533
    %v718 = vmul.f32 %v716, %v534
    %v719 = vadd.f32 %v701, %v717
    %v720 = vadd.f32 %v702, %v718
    %s721 = sld [smem:[#allocation9 + $0x20]]
    %v722 = vstv %s721
    %v723 = vmul.f32 %v722, %v533
    %v724 = vmul.f32 %v722, %v534
    %v725 = vadd.f32 %v707, %v723
    %v726 = vadd.f32 %v708, %v724
    %727 = vrot.lane.b32.xlu0 %v533, 127
    %v728 = vpop.permute.xlu0 %727
    %729 = vrot.lane.b32.xlu0 %v534, 127
    %v730 = vpop.permute.xlu0 %729
    %s731 = sld [smem:[#allocation9 + $0x9]]
    %v732 = vstv %s731
    %v733 = vmul.f32 %v732, %v728
    %v734 = vmul.f32 %v732, %v730
    %v735 = vadd.f32 %v713, %v733
    %v736 = vadd.f32 %v714, %v734
    %s737 = sld [smem:[#allocation9 + $0x15]]
    %v738 = vstv %s737
    %v739 = vmul.f32 %v738, %v728
    %v740 = vmul.f32 %v738, %v730
    %v741 = vadd.f32 %v719, %v739
    %v742 = vadd.f32 %v720, %v740
    %s743 = sld [smem:[#allocation9 + $0x21]]
    %v744 = vstv %s743
    %v745 = vmul.f32 %v744, %v728
    %v746 = vmul.f32 %v744, %v730
    %v747 = vadd.f32 %v725, %v745
    %v748 = vadd.f32 %v726, %v746
    %v749 = vrot.slane %v533, 1
    %v750 = vrot.slane %v534, 1
    %v751 = vsel %vm144, %v749, %v750
    %v752 = vsel %vm144, %v750, %v749
    %s753 = sld [smem:[#allocation9 + $0xa]]
    %v754 = vstv %s753
    %v755 = vmul.f32 %v754, %v751
    %v756 = vmul.f32 %v754, %v752
    %v757 = vadd.f32 %v735, %v755
    %v758 = vadd.f32 %v736, %v756
    %s759 = sld [smem:[#allocation9 + $0x16]]
    %v760 = vstv %s759
    %v761 = vmul.f32 %v760, %v751
    %v762 = vmul.f32 %v760, %v752
    %v763 = vadd.f32 %v741, %v761
    %v764 = vadd.f32 %v742, %v762
    %s765 = sld [smem:[#allocation9 + $0x22]]
    %v766 = vstv %s765
    %v767 = vmul.f32 %v766, %v751
    %v768 = vmul.f32 %v766, %v752
    %v769 = vadd.f32 %v747, %v767
    %v770 = vadd.f32 %v748, %v768
    %771 = vrot.lane.b32.xlu0 %v751, 127
    %v772 = vpop.permute.xlu0 %771
    %773 = vrot.lane.b32.xlu0 %v752, 127
    %v774 = vpop.permute.xlu0 %773
    %s775 = sld [smem:[#allocation9 + $0xb]]
    %v776 = vstv %s775
    %v777 = vmul.f32 %v776, %v772
    %v778 = vmul.f32 %v776, %v774
    %v779 = vadd.f32 %v757, %v777
    %v780 = vadd.f32 %v758, %v778
    %s781 = sld [smem:[#allocation9 + $0x17]]
    %v782 = vstv %s781
    %v783 = vmul.f32 %v782, %v772
    %v784 = vmul.f32 %v782, %v774
    %v785 = vadd.f32 %v763, %v783
    %v786 = vadd.f32 %v764, %v784
    %s787 = sld [smem:[#allocation9 + $0x23]]
    %v788 = vstv %s787
    %v789 = vmul.f32 %v788, %v772
    %v790 = vmul.f32 %v788, %v774
    %v791 = vadd.f32 %v769, %v789
    %v792 = vadd.f32 %v770, %v790
    %v793 = vmul.f32 %v542, %v779
    %v794 = vmul.f32 %v542, %v780
    %v795 = vadd.f32 %v536, %v793
    %v796 = vadd.f32 %v536, %v794
    %v797 = vmul.f32 %v548, %v779
    %v798 = vmul.f32 %v548, %v780
    %v799 = vadd.f32 %v538, %v797
    %v800 = vadd.f32 %v538, %v798
    %v801 = vmul.f32 %v554, %v779
    %v802 = vmul.f32 %v554, %v780
    %v803 = vadd.f32 %v540, %v801
    %v804 = vadd.f32 %v540, %v802
    %805 = vrot.lane.b32.xlu0 %v779, 127
    %v806 = vpop.permute.xlu0 %805
    %807 = vrot.lane.b32.xlu0 %v780, 127
    %v808 = vpop.permute.xlu0 %807
    %v809 = vmul.f32 %v564, %v806
    %v810 = vmul.f32 %v564, %v808
    %v811 = vadd.f32 %v795, %v809
    %v812 = vadd.f32 %v796, %v810
    %v813 = vmul.f32 %v570, %v806
    %v814 = vmul.f32 %v570, %v808
    %v815 = vadd.f32 %v799, %v813
    %v816 = vadd.f32 %v800, %v814
    %v817 = vmul.f32 %v576, %v806
    %v818 = vmul.f32 %v576, %v808
    %v819 = vadd.f32 %v803, %v817
    %v820 = vadd.f32 %v804, %v818
    %v821 = vrot.slane %v779, 1
    %v822 = vrot.slane %v780, 1
    %v823 = vsel %vm144, %v821, %v822
    %v824 = vsel %vm144, %v822, %v821
    %v825 = vmul.f32 %v586, %v823
    %v826 = vmul.f32 %v586, %v824
    %v827 = vadd.f32 %v811, %v825
    %v828 = vadd.f32 %v812, %v826
    %v829 = vmul.f32 %v592, %v823
    %v830 = vmul.f32 %v592, %v824
    %v831 = vadd.f32 %v815, %v829
    %v832 = vadd.f32 %v816, %v830
    %v833 = vmul.f32 %v598, %v823
    %v834 = vmul.f32 %v598, %v824
    %v835 = vadd.f32 %v819, %v833
    %v836 = vadd.f32 %v820, %v834
    %837 = vrot.lane.b32.xlu0 %v823, 127
    %v838 = vpop.permute.xlu0 %837
    %839 = vrot.lane.b32.xlu0 %v824, 127
    %v840 = vpop.permute.xlu0 %839
    %v841 = vmul.f32 %v608, %v838
    %v842 = vmul.f32 %v608, %v840
    %v843 = vadd.f32 %v827, %v841
    %v844 = vadd.f32 %v828, %v842
    %v845 = vmul.f32 %v614, %v838
    %v846 = vmul.f32 %v614, %v840
    %v847 = vadd.f32 %v831, %v845
    %v848 = vadd.f32 %v832, %v846
    %v849 = vmul.f32 %v620, %v838
    %v850 = vmul.f32 %v620, %v840
    %v851 = vadd.f32 %v835, %v849
    %v852 = vadd.f32 %v836, %v850
    %v853 = vmul.f32 %v626, %v785
    %v854 = vmul.f32 %v626, %v786
    %v855 = vadd.f32 %v843, %v853
    %v856 = vadd.f32 %v844, %v854
    %v857 = vmul.f32 %v632, %v785
    %v858 = vmul.f32 %v632, %v786
    %v859 = vadd.f32 %v847, %v857
    %v860 = vadd.f32 %v848, %v858
    %v861 = vmul.f32 %v638, %v785
    %v862 = vmul.f32 %v638, %v786
    %v863 = vadd.f32 %v851, %v861
    %v864 = vadd.f32 %v852, %v862
    %865 = vrot.lane.b32.xlu0 %v785, 127
    %v866 = vpop.permute.xlu0 %865
    %867 = vrot.lane.b32.xlu0 %v786, 127
    %v868 = vpop.permute.xlu0 %867
    %v869 = vmul.f32 %v648, %v866
    %v870 = vmul.f32 %v648, %v868
    %v871 = vadd.f32 %v855, %v869
    %v872 = vadd.f32 %v856, %v870
    %v873 = vmul.f32 %v654, %v866
    %v874 = vmul.f32 %v654, %v868
    %v875 = vadd.f32 %v859, %v873
    %v876 = vadd.f32 %v860, %v874
    %v877 = vmul.f32 %v660, %v866
    %v878 = vmul.f32 %v660, %v868
    %v879 = vadd.f32 %v863, %v877
    %v880 = vadd.f32 %v864, %v878
    %v881 = vrot.slane %v785, 1
    %v882 = vrot.slane %v786, 1
    %v883 = vsel %vm144, %v881, %v882
    %v884 = vsel %vm144, %v882, %v881
    %v885 = vmul.f32 %v670, %v883
    %v886 = vmul.f32 %v670, %v884
    %v887 = vadd.f32 %v871, %v885
    %v888 = vadd.f32 %v872, %v886
    %v889 = vmul.f32 %v676, %v883
    %v890 = vmul.f32 %v676, %v884
    %v891 = vadd.f32 %v875, %v889
    %v892 = vadd.f32 %v876, %v890
    %v893 = vmul.f32 %v682, %v883
    %v894 = vmul.f32 %v682, %v884
    %v895 = vadd.f32 %v879, %v893
    %v896 = vadd.f32 %v880, %v894
    %897 = vrot.lane.b32.xlu0 %v883, 127
    %v898 = vpop.permute.xlu0 %897
    %899 = vrot.lane.b32.xlu0 %v884, 127
    %v900 = vpop.permute.xlu0 %899
    %v901 = vmul.f32 %v692, %v898
    %v902 = vmul.f32 %v692, %v900
    %v903 = vadd.f32 %v887, %v901
    %v904 = vadd.f32 %v888, %v902
    %v905 = vmul.f32 %v698, %v898
    %v906 = vmul.f32 %v698, %v900
    %v907 = vadd.f32 %v891, %v905
    %v908 = vadd.f32 %v892, %v906
    %v909 = vmul.f32 %v704, %v898
    %v910 = vmul.f32 %v704, %v900
    %v911 = vadd.f32 %v895, %v909
    %v912 = vadd.f32 %v896, %v910
    %v913 = vmul.f32 %v710, %v791
    %v914 = vmul.f32 %v710, %v792
    %v915 = vadd.f32 %v903, %v913
    %v916 = vadd.f32 %v904, %v914
    %v917 = vmul.f32 %v716, %v791
    %v918 = vmul.f32 %v716, %v792
    %v919 = vadd.f32 %v907, %v917
    %v920 = vadd.f32 %v908, %v918
    %v921 = vmul.f32 %v722, %v791
    %v922 = vmul.f32 %v722, %v792
    %v923 = vadd.f32 %v911, %v921
    %v924 = vadd.f32 %v912, %v922
    %925 = vrot.lane.b32.xlu0 %v791, 127
    %v926 = vpop.permute.xlu0 %925
    %927 = vrot.lane.b32.xlu0 %v792, 127
    %v928 = vpop.permute.xlu0 %927
    %v929 = vmul.f32 %v732, %v926
    %v930 = vmul.f32 %v732, %v928
    %v931 = vadd.f32 %v915, %v929
    %v932 = vadd.f32 %v916, %v930
    %v933 = vmul.f32 %v738, %v926
    %v934 = vmul.f32 %v738, %v928
    %v935 = vadd.f32 %v919, %v933
    %v936 = vadd.f32 %v920, %v934
    %v937 = vmul.f32 %v744, %v926
    %v938 = vmul.f32 %v744, %v928
    %v939 = vadd.f32 %v923, %v937
    %v940 = vadd.f32 %v924, %v938
    %v941 = vrot.slane %v791, 1
    %v942 = vrot.slane %v792, 1
    %v943 = vsel %vm144, %v941, %v942
    %v944 = vsel %vm144, %v942, %v941
    %v945 = vmul.f32 %v754, %v943
    %v946 = vmul.f32 %v754, %v944
    %v947 = vadd.f32 %v931, %v945
    %v948 = vadd.f32 %v932, %v946
    %v949 = vmul.f32 %v760, %v943
    %v950 = vmul.f32 %v760, %v944
    %v951 = vadd.f32 %v935, %v949
    %v952 = vadd.f32 %v936, %v950
    %v953 = vmul.f32 %v766, %v943
    %v954 = vmul.f32 %v766, %v944
    %v955 = vadd.f32 %v939, %v953
    %v956 = vadd.f32 %v940, %v954
    %957 = vrot.lane.b32.xlu0 %v943, 127
    %v958 = vpop.permute.xlu0 %957
    %959 = vrot.lane.b32.xlu0 %v944, 127
    %v960 = vpop.permute.xlu0 %959
    %v961 = vmul.f32 %v776, %v958
    %v962 = vmul.f32 %v776, %v960
    %v963 = vadd.f32 %v947, %v961
    %v964 = vadd.f32 %v948, %v962
    %v965 = vmul.f32 %v782, %v958
    %v966 = vmul.f32 %v782, %v960
    %v967 = vadd.f32 %v951, %v965
    %v968 = vadd.f32 %v952, %v966
    %v969 = vmul.f32 %v788, %v958
    %v970 = vmul.f32 %v788, %v960
    %v971 = vadd.f32 %v955, %v969
    %v972 = vadd.f32 %v956, %v970
    %v973 = vmul.f32 %v101, %v963
    %v974 = vmul.f32 %v101, %v964
    %v975 = vadd.f32 %v536, %v973
    %v976 = vadd.f32 %v536, %v974
    %v977 = vmul.f32 %v107, %v963
    %v978 = vmul.f32 %v107, %v964
    %v979 = vadd.f32 %v538, %v977
    %v980 = vadd.f32 %v538, %v978
    %v981 = vmul.f32 %v113, %v963
    %v982 = vmul.f32 %v113, %v964
    %v983 = vadd.f32 %v540, %v981
    %v984 = vadd.f32 %v540, %v982
    %985 = vrot.lane.b32.xlu0 %v963, 127
    %v986 = vpop.permute.xlu0 %985
    %987 = vrot.lane.b32.xlu0 %v964, 127
    %v988 = vpop.permute.xlu0 %987
    %v989 = vmul.f32 %v123, %v986
    %v990 = vmul.f32 %v123, %v988
    %v991 = vadd.f32 %v975, %v989
    %v992 = vadd.f32 %v976, %v990
    %v993 = vmul.f32 %v129, %v986
    %v994 = vmul.f32 %v129, %v988
    %v995 = vadd.f32 %v979, %v993
    %v996 = vadd.f32 %v980, %v994
    %v997 = vmul.f32 %v135, %v986
    %v998 = vmul.f32 %v135, %v988
    %v999 = vadd.f32 %v983, %v997
    %v1000 = vadd.f32 %v984, %v998
    %v1001 = vrot.slane %v963, 1
    %v1002 = vrot.slane %v964, 1
    %v1003 = vsel %vm144, %v1001, %v1002
    %v1004 = vsel %vm144, %v1002, %v1001
    %v1005 = vmul.f32 %v148, %v1003
    %v1006 = vmul.f32 %v148, %v1004
    %v1007 = vadd.f32 %v991, %v1005
    %v1008 = vadd.f32 %v992, %v1006
    %v1009 = vmul.f32 %v154, %v1003
    %v1010 = vmul.f32 %v154, %v1004
    %v1011 = vadd.f32 %v995, %v1009
    %v1012 = vadd.f32 %v996, %v1010
    %v1013 = vmul.f32 %v160, %v1003
    %v1014 = vmul.f32 %v160, %v1004
    %v1015 = vadd.f32 %v999, %v1013
    %v1016 = vadd.f32 %v1000, %v1014
    %1017 = vrot.lane.b32.xlu0 %v1003, 127
    %v1018 = vpop.permute.xlu0 %1017
    %1019 = vrot.lane.b32.xlu0 %v1004, 127
    %v1020 = vpop.permute.xlu0 %1019
    %v1021 = vmul.f32 %v170, %v1018
    %v1022 = vmul.f32 %v170, %v1020
    %v1023 = vadd.f32 %v1007, %v1021
    %v1024 = vadd.f32 %v1008, %v1022
    %v1025 = vmul.f32 %v176, %v1018
    %v1026 = vmul.f32 %v176, %v1020
    %v1027 = vadd.f32 %v1011, %v1025
    %v1028 = vadd.f32 %v1012, %v1026
    %v1029 = vmul.f32 %v182, %v1018
    %v1030 = vmul.f32 %v182, %v1020
    %v1031 = vadd.f32 %v1015, %v1029
    %v1032 = vadd.f32 %v1016, %v1030
    %v1033 = vmul.f32 %v188, %v967
    %v1034 = vmul.f32 %v188, %v968
    %v1035 = vadd.f32 %v1023, %v1033
    %v1036 = vadd.f32 %v1024, %v1034
    %v1037 = vmul.f32 %v194, %v967
    %v1038 = vmul.f32 %v194, %v968
    %v1039 = vadd.f32 %v1027, %v1037
    %v1040 = vadd.f32 %v1028, %v1038
    %v1041 = vmul.f32 %v200, %v967
    %v1042 = vmul.f32 %v200, %v968
    %v1043 = vadd.f32 %v1031, %v1041
    %v1044 = vadd.f32 %v1032, %v1042
    %1045 = vrot.lane.b32.xlu0 %v967, 127
    %v1046 = vpop.permute.xlu0 %1045
    %1047 = vrot.lane.b32.xlu0 %v968, 127
    %v1048 = vpop.permute.xlu0 %1047
    %v1049 = vmul.f32 %v210, %v1046
    %v1050 = vmul.f32 %v210, %v1048
    %v1051 = vadd.f32 %v1035, %v1049
    %v1052 = vadd.f32 %v1036, %v1050
    %v1053 = vmul.f32 %v216, %v1046
    %v1054 = vmul.f32 %v216, %v1048
    %v1055 = vadd.f32 %v1039, %v1053
    %v1056 = vadd.f32 %v1040, %v1054
    %v1057 = vmul.f32 %v222, %v1046
    %v1058 = vmul.f32 %v222, %v1048
    %v1059 = vadd.f32 %v1043, %v1057
    %v1060 = vadd.f32 %v1044, %v1058
    %v1061 = vrot.slane %v967, 1
    %v1062 = vrot.slane %v968, 1
    %v1063 = vsel %vm144, %v1061, %v1062
    %v1064 = vsel %vm144, %v1062, %v1061
    %v1065 = vmul.f32 %v232, %v1063
    %v1066 = vmul.f32 %v232, %v1064
    %v1067 = vadd.f32 %v1051, %v1065
    %v1068 = vadd.f32 %v1052, %v1066
    %v1069 = vmul.f32 %v238, %v1063
    %v1070 = vmul.f32 %v238, %v1064
    %v1071 = vadd.f32 %v1055, %v1069
    %v1072 = vadd.f32 %v1056, %v1070
    %v1073 = vmul.f32 %v244, %v1063
    %v1074 = vmul.f32 %v244, %v1064
    %v1075 = vadd.f32 %v1059, %v1073
    %v1076 = vadd.f32 %v1060, %v1074
    %1077 = vrot.lane.b32.xlu0 %v1063, 127
    %v1078 = vpop.permute.xlu0 %1077
    %1079 = vrot.lane.b32.xlu0 %v1064, 127
    %v1080 = vpop.permute.xlu0 %1079
    %v1081 = vmul.f32 %v254, %v1078
    %v1082 = vmul.f32 %v254, %v1080
    %v1083 = vadd.f32 %v1067, %v1081
    %v1084 = vadd.f32 %v1068, %v1082
    %v1085 = vmul.f32 %v260, %v1078
    %v1086 = vmul.f32 %v260, %v1080
    %v1087 = vadd.f32 %v1071, %v1085
    %v1088 = vadd.f32 %v1072, %v1086
    %v1089 = vmul.f32 %v266, %v1078
    %v1090 = vmul.f32 %v266, %v1080
    %v1091 = vadd.f32 %v1075, %v1089
    %v1092 = vadd.f32 %v1076, %v1090
    %v1093 = vmul.f32 %v272, %v971
    %v1094 = vmul.f32 %v272, %v972
    %v1095 = vadd.f32 %v1083, %v1093
    %v1096 = vadd.f32 %v1084, %v1094
    %v1097 = vmul.f32 %v278, %v971
    %v1098 = vmul.f32 %v278, %v972
    %v1099 = vadd.f32 %v1087, %v1097
    %v1100 = vadd.f32 %v1088, %v1098
    %v1101 = vmul.f32 %v284, %v971
    %v1102 = vmul.f32 %v284, %v972
    %v1103 = vadd.f32 %v1091, %v1101
    %v1104 = vadd.f32 %v1092, %v1102
    %1105 = vrot.lane.b32.xlu0 %v971, 127
    %v1106 = vpop.permute.xlu0 %1105
    %1107 = vrot.lane.b32.xlu0 %v972, 127
    %v1108 = vpop.permute.xlu0 %1107
    %v1109 = vmul.f32 %v294, %v1106
    %v1110 = vmul.f32 %v294, %v1108
    %v1111 = vadd.f32 %v1095, %v1109
    %v1112 = vadd.f32 %v1096, %v1110
    %v1113 = vmul.f32 %v300, %v1106
    %v1114 = vmul.f32 %v300, %v1108
    %v1115 = vadd.f32 %v1099, %v1113
    %v1116 = vadd.f32 %v1100, %v1114
    %v1117 = vmul.f32 %v306, %v1106
    %v1118 = vmul.f32 %v306, %v1108
    %v1119 = vadd.f32 %v1103, %v1117
    %v1120 = vadd.f32 %v1104, %v1118
    %v1121 = vrot.slane %v971, 1
    %v1122 = vrot.slane %v972, 1
    %v1123 = vsel %vm144, %v1121, %v1122
    %v1124 = vsel %vm144, %v1122, %v1121
    %v1125 = vmul.f32 %v316, %v1123
    %v1126 = vmul.f32 %v316, %v1124
    %v1127 = vadd.f32 %v1111, %v1125
    %v1128 = vadd.f32 %v1112, %v1126
    %v1129 = vmul.f32 %v322, %v1123
    %v1130 = vmul.f32 %v322, %v1124
    %v1131 = vadd.f32 %v1115, %v1129
    %v1132 = vadd.f32 %v1116, %v1130
    %v1133 = vmul.f32 %v328, %v1123
    %v1134 = vmul.f32 %v328, %v1124
    %v1135 = vadd.f32 %v1119, %v1133
    %v1136 = vadd.f32 %v1120, %v1134
    %1137 = vrot.lane.b32.xlu0 %v1123, 127
    %v1138 = vpop.permute.xlu0 %1137
    %1139 = vrot.lane.b32.xlu0 %v1124, 127
    %v1140 = vpop.permute.xlu0 %1139
    %v1141 = vmul.f32 %v338, %v1138
    %v1142 = vmul.f32 %v338, %v1140
    %v1143 = vadd.f32 %v1127, %v1141
    %v1144 = vadd.f32 %v1128, %v1142
    %v1145 = vmul.f32 %v344, %v1138
    %v1146 = vmul.f32 %v344, %v1140
    %v1147 = vadd.f32 %v1131, %v1145
    %v1148 = vadd.f32 %v1132, %v1146
    %v1149 = vmul.f32 %v350, %v1138
    %v1150 = vmul.f32 %v350, %v1140
    %v1151 = vadd.f32 %v1135, %v1149
    %v1152 = vadd.f32 %v1136, %v1150
    %v1153 = vmul.f32 %v542, %v1143
    %v1154 = vmul.f32 %v542, %v1144
    %v1155 = vadd.f32 %v95, %v1153
    %v1156 = vadd.f32 %v95, %v1154
    %v1157 = vmul.f32 %v548, %v1143
    %v1158 = vmul.f32 %v548, %v1144
    %v1159 = vadd.f32 %v97, %v1157
    %v1160 = vadd.f32 %v97, %v1158
    %v1161 = vmul.f32 %v554, %v1143
    %v1162 = vmul.f32 %v554, %v1144
    %v1163 = vadd.f32 %v99, %v1161
    %v1164 = vadd.f32 %v99, %v1162
    %1165 = vrot.lane.b32.xlu0 %v1143, 127
    %v1166 = vpop.permute.xlu0 %1165
    %1167 = vrot.lane.b32.xlu0 %v1144, 127
    %v1168 = vpop.permute.xlu0 %1167
    %v1169 = vmul.f32 %v564, %v1166
    %v1170 = vmul.f32 %v564, %v1168
    %v1171 = vadd.f32 %v1155, %v1169
    %v1172 = vadd.f32 %v1156, %v1170
    %v1173 = vmul.f32 %v570, %v1166
    %v1174 = vmul.f32 %v570, %v1168
    %v1175 = vadd.f32 %v1159, %v1173
    %v1176 = vadd.f32 %v1160, %v1174
    %v1177 = vmul.f32 %v576, %v1166
    %v1178 = vmul.f32 %v576, %v1168
    %v1179 = vadd.f32 %v1163, %v1177
    %v1180 = vadd.f32 %v1164, %v1178
    %v1181 = vrot.slane %v1143, 1
    %v1182 = vrot.slane %v1144, 1
    %v1183 = vsel %vm144, %v1181, %v1182
    %v1184 = vsel %vm144, %v1182, %v1181
    %v1185 = vmul.f32 %v586, %v1183
    %v1186 = vmul.f32 %v586, %v1184
    %v1187 = vadd.f32 %v1171, %v1185
    %v1188 = vadd.f32 %v1172, %v1186
    %v1189 = vmul.f32 %v592, %v1183
    %v1190 = vmul.f32 %v592, %v1184
    %v1191 = vadd.f32 %v1175, %v1189
    %v1192 = vadd.f32 %v1176, %v1190
    %v1193 = vmul.f32 %v598, %v1183
    %v1194 = vmul.f32 %v598, %v1184
    %v1195 = vadd.f32 %v1179, %v1193
    %v1196 = vadd.f32 %v1180, %v1194
    %1197 = vrot.lane.b32.xlu0 %v1183, 127
    %v1198 = vpop.permute.xlu0 %1197
    %1199 = vrot.lane.b32.xlu0 %v1184, 127
    %v1200 = vpop.permute.xlu0 %1199
    %v1201 = vmul.f32 %v608, %v1198
    %v1202 = vmul.f32 %v608, %v1200
    %v1203 = vadd.f32 %v1187, %v1201
    %v1204 = vadd.f32 %v1188, %v1202
    %v1205 = vmul.f32 %v614, %v1198
    %v1206 = vmul.f32 %v614, %v1200
    %v1207 = vadd.f32 %v1191, %v1205
    %v1208 = vadd.f32 %v1192, %v1206
    %v1209 = vmul.f32 %v620, %v1198
    %v1210 = vmul.f32 %v620, %v1200
    %v1211 = vadd.f32 %v1195, %v1209
    %v1212 = vadd.f32 %v1196, %v1210
    %v1213 = vmul.f32 %v626, %v1147
    %v1214 = vmul.f32 %v626, %v1148
    %v1215 = vadd.f32 %v1203, %v1213
    %v1216 = vadd.f32 %v1204, %v1214
    %v1217 = vmul.f32 %v632, %v1147
    %v1218 = vmul.f32 %v632, %v1148
    %v1219 = vadd.f32 %v1207, %v1217
    %v1220 = vadd.f32 %v1208, %v1218
    %v1221 = vmul.f32 %v638, %v1147
    %v1222 = vmul.f32 %v638, %v1148
    %v1223 = vadd.f32 %v1211, %v1221
    %v1224 = vadd.f32 %v1212, %v1222
    %1225 = vrot.lane.b32.xlu0 %v1147, 127
    %v1226 = vpop.permute.xlu0 %1225
    %1227 = vrot.lane.b32.xlu0 %v1148, 127
    %v1228 = vpop.permute.xlu0 %1227
    %v1229 = vmul.f32 %v648, %v1226
    %v1230 = vmul.f32 %v648, %v1228
    %v1231 = vadd.f32 %v1215, %v1229
    %v1232 = vadd.f32 %v1216, %v1230
    %v1233 = vmul.f32 %v654, %v1226
    %v1234 = vmul.f32 %v654, %v1228
    %v1235 = vadd.f32 %v1219, %v1233
    %v1236 = vadd.f32 %v1220, %v1234
    %v1237 = vmul.f32 %v660, %v1226
    %v1238 = vmul.f32 %v660, %v1228
    %v1239 = vadd.f32 %v1223, %v1237
    %v1240 = vadd.f32 %v1224, %v1238
    %v1241 = vrot.slane %v1147, 1
    %v1242 = vrot.slane %v1148, 1
    %v1243 = vsel %vm144, %v1241, %v1242
    %v1244 = vsel %vm144, %v1242, %v1241
    %v1245 = vmul.f32 %v670, %v1243
    %v1246 = vmul.f32 %v670, %v1244
    %v1247 = vadd.f32 %v1231, %v1245
    %v1248 = vadd.f32 %v1232, %v1246
    %v1249 = vmul.f32 %v676, %v1243
    %v1250 = vmul.f32 %v676, %v1244
    %v1251 = vadd.f32 %v1235, %v1249
    %v1252 = vadd.f32 %v1236, %v1250
    %v1253 = vmul.f32 %v682, %v1243
    %v1254 = vmul.f32 %v682, %v1244
    %v1255 = vadd.f32 %v1239, %v1253
    %v1256 = vadd.f32 %v1240, %v1254
    %1257 = vrot.lane.b32.xlu0 %v1243, 127
    %v1258 = vpop.permute.xlu0 %1257
    %1259 = vrot.lane.b32.xlu0 %v1244, 127
    %v1260 = vpop.permute.xlu0 %1259
    %v1261 = vmul.f32 %v692, %v1258
    %v1262 = vmul.f32 %v692, %v1260
    %v1263 = vadd.f32 %v1247, %v1261
    %v1264 = vadd.f32 %v1248, %v1262
    %v1265 = vmul.f32 %v698, %v1258
    %v1266 = vmul.f32 %v698, %v1260
    %v1267 = vadd.f32 %v1251, %v1265
    %v1268 = vadd.f32 %v1252, %v1266
    %v1269 = vmul.f32 %v704, %v1258
    %v1270 = vmul.f32 %v704, %v1260
    %v1271 = vadd.f32 %v1255, %v1269
    %v1272 = vadd.f32 %v1256, %v1270
    %v1273 = vmul.f32 %v710, %v1151
    %v1274 = vmul.f32 %v710, %v1152
    %v1275 = vadd.f32 %v1263, %v1273
    %v1276 = vadd.f32 %v1264, %v1274
    %v1277 = vmul.f32 %v716, %v1151
    %v1278 = vmul.f32 %v716, %v1152
    %v1279 = vadd.f32 %v1267, %v1277
    %v1280 = vadd.f32 %v1268, %v1278
    %v1281 = vmul.f32 %v722, %v1151
    %v1282 = vmul.f32 %v722, %v1152
    %v1283 = vadd.f32 %v1271, %v1281
    %v1284 = vadd.f32 %v1272, %v1282
    %1285 = vrot.lane.b32.xlu0 %v1151, 127
    %v1286 = vpop.permute.xlu0 %1285
    %1287 = vrot.lane.b32.xlu0 %v1152, 127
    %v1288 = vpop.permute.xlu0 %1287
    %v1289 = vmul.f32 %v732, %v1286
    %v1290 = vmul.f32 %v732, %v1288
    %v1291 = vadd.f32 %v1275, %v1289
    %v1292 = vadd.f32 %v1276, %v1290
    %v1293 = vmul.f32 %v738, %v1286
    %v1294 = vmul.f32 %v738, %v1288
    %v1295 = vadd.f32 %v1279, %v1293
    %v1296 = vadd.f32 %v1280, %v1294
    %v1297 = vmul.f32 %v744, %v1286
    %v1298 = vmul.f32 %v744, %v1288
    %v1299 = vadd.f32 %v1283, %v1297
    %v1300 = vadd.f32 %v1284, %v1298
    %v1301 = vrot.slane %v1151, 1
    %v1302 = vrot.slane %v1152, 1
    %v1303 = vsel %vm144, %v1301, %v1302
    %v1304 = vsel %vm144, %v1302, %v1301
    %v1305 = vmul.f32 %v754, %v1303
    %v1306 = vmul.f32 %v754, %v1304
    %v1307 = vadd.f32 %v1291, %v1305
    %v1308 = vadd.f32 %v1292, %v1306
    %v1309 = vmul.f32 %v760, %v1303
    %v1310 = vmul.f32 %v760, %v1304
    %v1311 = vadd.f32 %v1295, %v1309
    %v1312 = vadd.f32 %v1296, %v1310
    %v1313 = vmul.f32 %v766, %v1303
    %v1314 = vmul.f32 %v766, %v1304
    %v1315 = vadd.f32 %v1299, %v1313
    %v1316 = vadd.f32 %v1300, %v1314
    %1317 = vrot.lane.b32.xlu0 %v1303, 127
    %v1318 = vpop.permute.xlu0 %1317
    %1319 = vrot.lane.b32.xlu0 %v1304, 127
    %v1320 = vpop.permute.xlu0 %1319
    %v1321 = vmul.f32 %v776, %v1318
    %v1322 = vmul.f32 %v776, %v1320
    %v1323 = vadd.f32 %v1307, %v1321
    %v1324 = vadd.f32 %v1308, %v1322
    %v1325 = vmul.f32 %v782, %v1318
    %v1326 = vmul.f32 %v782, %v1320
    %v1327 = vadd.f32 %v1311, %v1325
    %v1328 = vadd.f32 %v1312, %v1326
    %v1329 = vmul.f32 %v788, %v1318
    %v1330 = vmul.f32 %v788, %v1320
    %v1331 = vadd.f32 %v1315, %v1329
    %v1332 = vadd.f32 %v1316, %v1330
    %1333 = vst [vmem:[#allocation13] sm:$0xff] %v1323
    %1334 = vst [vmem:[#allocation13 + $0x8] sm:$0xff] %v1324
    %s1335 = scalar_lea.vmem [#allocation13], 16
    %1336 = vst [vmem:[%s1335] sm:$0xff] %v1327
    %1337 = vst [vmem:[%s1335 + $0x8] sm:$0xff] %v1328
    %s1338 = scalar_lea.vmem [#allocation13], 32
    %1339 = vst [vmem:[%s1338] sm:$0xff] %v1331
    %1340 = vst [vmem:[%s1338 + $0x8] sm:$0xff] %v1332
    // Predicated region
    $region42: #{tpu_custom_call.1} parent=1 // pred_check
      _
    $region43: #{tpu_custom_call.1} parent=1 // pred_check_branch
      %1342 = sbr.rel (0) target = $region45
    $region44: #{tpu_custom_call.1} parent=1 // pred_region
      %1344 = vsyncadd [#allocation4], 0
      %s1345 = sshll.u32 [#allocation13], 4
      %s1346 = int_to_ptr.vmem [resolvable:$true] %s1345
      %s1347 = sshll.u32 %s5, 4
      %s1348 = int_to_ptr.hbm [resolvable:$true] %s1347
      %1353 = dma.vmem_to_hbm [thread:$0]  %s1346, 768, %s1348, [#allocation4], 128, 128, 8
    $region45: #{tpu_custom_call.1} parent=1 // pred_fallthru
      _
    // Predicated region
    $region46: #{tpu_custom_call.1} parent=1 // pred_check
      _
    $region47: #{tpu_custom_call.1} parent=1 // pred_check_branch
      %1355 = sbr.rel (0) target = $region49
    $region48: #{tpu_custom_call.1} parent=1 // pred_region
      %1357 = dma.done [#allocation4], 768
    $region49: #{tpu_custom_call.1} parent=1 // pred_fallthru
      _
    %1358 = vsyncpa [#allocation3], 1
    %1359 = vsyncpa [#allocation4], 1
    %1360 = vsyncpa [#allocation5], 1
    %1361 = vsyncpa [#allocation8], 1
    %1362 = vsyncpa [#allocation6], 1
    %1363 = vsyncpa [#allocation11], 1

</llo_original>
